<compile_context>
chip_gen: v7x
topology: tpu7x:2x2x1
jax: 0.10.0
libtpu: 0.0.40
codegen_flags: <defaults>
</compile_context>

<pallas_src>
import jax
import jax.numpy as jnp
from jax.experimental import pallas as pl
from jax.experimental.pallas import tpu as pltpu

IN_F = 4           # fc1 fan-in
H1 = 100           # fc1 fan-out
H2 = 500           # fc2 fan-out
OUT_F = 3          # fc3 fan-out
H1_PAD = 128       # 100 -> 128 (sublane axis of h1)
H2_PAD = 512       # 500 -> 512 (sublane axis of h2)
OUT_STORE = 8      # 3 -> 8 stored output rows (sublane-aligned; wrapper slices [:3])
X_ROWS = 8         # 4 -> 8 stored input rows (sublane-aligned; kernel reads rows 0..3)


def _round_up(n, m):
    return ((n + m - 1) // m) * m


def _cdiv(a, b):
    return (a + b - 1) // b


def driving_net_kernel(x_ref, w1_ref, b1_ref, w2_ref, b2_ref, w3_ref, b3_ref, o_ref):
    # Layout: batch on the lane axis (columns), features on sublanes (rows).
    #   x_ref : (8, TILE_B) f32, rows 0..3 real
    #   w1_ref: (128, 4) f32, b1_ref: (128, 1) f32
    #   w2_ref: (512, 128) bf16, b2_ref: (512, 1) f32
    #   w3_ref: (8, 512) bf16,  b3_ref: (8, 1) f32
    #   o_ref : (8, TILE_B) f32

    # fc1 + ReLU on the VPU: K=4 unrolled outer-product FMAs (keeps the tiny
    # contraction off the MXU; x rows are stride-0 sublane broadcasts).
    h1 = b1_ref[...]                                          # (128, 1)
    for k in range(IN_F):
        h1 = h1 + w1_ref[:, k:k + 1] * x_ref[k:k + 1, :]      # (128, TILE_B)
    h1 = jnp.maximum(h1, 0.0)

    # fc2 + ReLU on the MXU (low-precision inputs, f32 accumulation).
    h2 = jnp.dot(w2_ref[...], h1.astype(w2_ref.dtype),
                 preferred_element_type=jnp.float32)          # (512, TILE_B)
    h2 = jnp.maximum(h2 + b2_ref[...], 0.0)

    # fc3 on the MXU; only 8 output rows -> lane-dense, cheap writeback.
    out = jnp.dot(w3_ref[...], h2.astype(w3_ref.dtype),
                  preferred_element_type=jnp.float32)         # (8, TILE_B)
    o_ref[...] = (out + b3_ref[...]).astype(o_ref.dtype)


def pad_params(params, mxu_dtype=jnp.bfloat16):
    """Transpose + zero-pad params to sublane/lane-aligned shapes.

    mxu_dtype: jnp.bfloat16 (recommended on v5e, MXU-bound there) or
               jnp.float32 (fine on v6e/v7x, where the kernel is not MXU-bound,
               for tighter accuracy vs. the float64 reference).
    Zero padding is numerically exact for this ReLU MLP (padded biases are 0).
    """
    w1, b1, w2, b2, w3, b3 = params   # w: (fan_in, fan_out), b: (1, fan_out)
    w1t = jnp.zeros((H1_PAD, IN_F), jnp.float32).at[:H1, :].set(w1.T)
    b1t = jnp.zeros((H1_PAD, 1), jnp.float32).at[:H1, :].set(b1.T)
    w2t = (jnp.zeros((H2_PAD, H1_PAD), jnp.float32)
           .at[:H2, :H1].set(w2.T).astype(mxu_dtype))
    b2t = jnp.zeros((H2_PAD, 1), jnp.float32).at[:H2, :].set(b2.T)
    w3t = (jnp.zeros((OUT_STORE, H2_PAD), jnp.float32)
           .at[:OUT_F, :H2].set(w3.T).astype(mxu_dtype))
    b3t = jnp.zeros((OUT_STORE, 1), jnp.float32).at[:OUT_F, :].set(b3.T)
    return (w1t, b1t, w2t, b2t, w3t, b3t)


def driving_net_forward(x, padded_params, *, max_tile_b=2048):
    """Forward pass. max_tile_b: cap on the per-step batch tile (lanes).
    Sweep 1024-4096; prefer ~1024 on v5e (MXU-bound, single vst slot)."""
    w1, b1, w2, b2, w3, b3 = padded_params
    B = x.shape[0]
    x = x.astype(jnp.float32)

    # Grid sizing: keep batch padding small (<= 127 rows per step), and use
    # >= 2 steps whenever B >= 256 so the v7x megacore gets both TensorCores
    # busy ("parallel" batch axis); v5e/v6e are unaffected by the step count.
    n_steps = max(_cdiv(B, max_tile_b), min(2, _cdiv(B, 128)))
    n_steps = max(n_steps, 1)
    tile_b = _round_up(_cdiv(B, n_steps), 128)
    b_pad = n_steps * tile_b

    # Batch-on-lanes layout: x^T zero-padded to (8, b_pad); kernel reads rows 0..3.
    xt = jnp.zeros((X_ROWS, b_pad), jnp.float32).at[:IN_F, :B].set(x.T)

    def resident(arr):
        # Whole-array block, same block index every grid step -> stays pinned
        # in VMEM; only activation tiles move HBM<->VMEM.
        # (pipeline_mode=pl.Buffered(1) would drop the dead second buffer and
        #  free ~0.5 MB of VMEM if more headroom is ever needed.)
        return pl.BlockSpec(arr.shape, lambda i: (0, 0))

    flops = 2 * b_pad * (IN_F * H1_PAD + H1_PAD * H2_PAD + H2_PAD * OUT_STORE)
    bytes_accessed = (
        xt.size * 4
        + sum(int(p.size) * p.dtype.itemsize for p in padded_params)
        + OUT_STORE * b_pad * 4
    )

    out_t = pl.pallas_call(
        driving_net_kernel,
        out_shape=jax.ShapeDtypeStruct((OUT_STORE, b_pad), jnp.float32),
        grid_spec=pltpu.PrefetchScalarGridSpec(
            num_scalar_prefetch=0,
            grid=(n_steps,),
            in_specs=[
                pl.BlockSpec((X_ROWS, tile_b), lambda i: (0, i)),   # x streams
                resident(w1), resident(b1),
                resident(w2), resident(b2),
                resident(w3), resident(b3),
            ],
            out_specs=pl.BlockSpec((OUT_STORE, tile_b), lambda i: (0, i)),
        ),
        compiler_params=pltpu.CompilerParams(
            dimension_semantics=("parallel",),      # megacore sharding on v7x
            vmem_limit_bytes=48 * 1024 * 1024,      # headroom; fits v7x's 64 MiB physical
        ),
        cost_estimate=pl.CostEstimate(
            flops=flops, transcendentals=0, bytes_accessed=bytes_accessed),
    )(xt, w1, b1, w2, b2, w3, b3)

    # (8, b_pad) -> (B, 3): tiny slice + transpose (a few KB of HBM traffic).
    return out_t[:OUT_F, :B].T


def init_params(key):
    """Deterministic init mimicking torch.nn.Linear default (U[-1/sqrt(fan_in), +1/sqrt(fan_in)])."""
    def linear(key, fan_in, fan_out):
        kw, kb = jax.random.split(key)
        bound = 1.0 / jnp.sqrt(fan_in)
        w = jax.random.uniform(kw, (fan_in, fan_out), jnp.float32, -bound, bound)
        b = jax.random.uniform(kb, (1, fan_out), jnp.float32, -bound, bound)
        return w, b

    k1, k2, k3 = jax.random.split(key, 3)
    w1, b1 = linear(k1, IN_F, H1)
    w2, b2 = linear(k2, H1, H2)
    w3, b3 = linear(k3, H2, OUT_F)
    return (w1, b1, w2, b2, w3, b3)


def reference_forward(x, params):
    w1, b1, w2, b2, w3, b3 = params
    h1 = jnp.maximum(x @ w1 + b1, 0.0)
    h2 = jnp.maximum(h1 @ w2 + b2, 0.0)
    return h2 @ w3 + b3


if __name__ == "__main__":
    key = jax.random.PRNGKey(0)
    kx, kp = jax.random.split(key)

    B = 8  # small demo batch; production batches stream through the grid
    x = jax.random.normal(kx, (B, IN_F), jnp.float32)
    params = init_params(kp)
    padded = pad_params(params)

    out = driving_net_forward(x, padded)
    out = jax.block_until_ready(out)

    ref = reference_forward(x, params)
    assert out.shape == (B, OUT_F)
    # bf16 MXU weights with f32 accumulation -> relaxed tolerance vs f32 reference.
    assert jnp.allclose(out, ref, atol=5e-2, rtol=5e-2), "mismatch vs reference"

    print("KERNEL_OK")
</pallas_src>

<mosaic_0001>
module attributes {stable_mosaic.version = 11 : i64} {
  func.func @driving_net_kernel(%arg0: i32, %arg1: memref<8x128xf32, #tpu.memory_space<vmem>>, %arg2: memref<128x4xf32, #tpu.memory_space<vmem>>, %arg3: memref<128x1xf32, #tpu.memory_space<vmem>>, %arg4: memref<512x128xbf16, #tpu.memory_space<vmem>>, %arg5: memref<512x1xf32, #tpu.memory_space<vmem>>, %arg6: memref<8x512xbf16, #tpu.memory_space<vmem>>, %arg7: memref<8x1xf32, #tpu.memory_space<vmem>>, %arg8: memref<8x128xf32, #tpu.memory_space<vmem>>) attributes {dimension_semantics = [#tpu.dimension_semantics<parallel>], iteration_bounds = array<i64: 1>, scalar_prefetch = 0 : i64, scratch_operands = 0 : i64, tpu.core_type = #tpu.core_type<tc>, window_params = [{transform_indices = @transform_0, window_bounds = array<i64: 8, 128>}, {pipeline_mode = #tpu.pipeline_mode<synchronous>, transform_indices = @transform_1, window_bounds = array<i64: 128, 4>}, {pipeline_mode = #tpu.pipeline_mode<synchronous>, transform_indices = @transform_2, window_bounds = array<i64: 128, 1>}, {pipeline_mode = #tpu.pipeline_mode<synchronous>, transform_indices = @transform_3, window_bounds = array<i64: 512, 128>}, {pipeline_mode = #tpu.pipeline_mode<synchronous>, transform_indices = @transform_4, window_bounds = array<i64: 512, 1>}, {pipeline_mode = #tpu.pipeline_mode<synchronous>, transform_indices = @transform_5, window_bounds = array<i64: 8, 512>}, {pipeline_mode = #tpu.pipeline_mode<synchronous>, transform_indices = @transform_6, window_bounds = array<i64: 8, 1>}, {transform_indices = @transform_7, window_bounds = array<i64: 8, 128>}]} {
    %c0 = arith.constant 0 : index
    %c0_0 = arith.constant 0 : index
    %0 = vector.load %arg3[%c0, %c0_0] : memref<128x1xf32, #tpu.memory_space<vmem>>, vector<128x1xf32>
    %c0_1 = arith.constant 0 : index
    %c0_2 = arith.constant 0 : index
    %1 = vector.load %arg2[%c0_1, %c0_2] : memref<128x4xf32, #tpu.memory_space<vmem>>, vector<128x1xf32>
    %c0_3 = arith.constant 0 : index
    %c0_4 = arith.constant 0 : index
    %2 = vector.load %arg1[%c0_3, %c0_4] : memref<8x128xf32, #tpu.memory_space<vmem>>, vector<1x128xf32>
    %3 = vector.broadcast %1 : vector<128x1xf32> to vector<128x128xf32>
    %4 = vector.broadcast %2 : vector<1x128xf32> to vector<128x128xf32>
    %5 = arith.mulf %3, %4 : vector<128x128xf32>
    %6 = vector.broadcast %0 : vector<128x1xf32> to vector<128x128xf32>
    %7 = arith.addf %6, %5 : vector<128x128xf32>
    %c0_5 = arith.constant 0 : index
    %c1 = arith.constant 1 : index
    %8 = vector.load %arg2[%c0_5, %c1] : memref<128x4xf32, #tpu.memory_space<vmem>>, vector<128x1xf32>
    %c1_6 = arith.constant 1 : index
    %c0_7 = arith.constant 0 : index
    %9 = vector.load %arg1[%c1_6, %c0_7] : memref<8x128xf32, #tpu.memory_space<vmem>>, vector<1x128xf32>
    %10 = vector.broadcast %8 : vector<128x1xf32> to vector<128x128xf32>
    %11 = vector.broadcast %9 : vector<1x128xf32> to vector<128x128xf32>
    %12 = arith.mulf %10, %11 : vector<128x128xf32>
    %13 = arith.addf %7, %12 : vector<128x128xf32>
    %c0_8 = arith.constant 0 : index
    %c2 = arith.constant 2 : index
    %14 = vector.load %arg2[%c0_8, %c2] : memref<128x4xf32, #tpu.memory_space<vmem>>, vector<128x1xf32>
    %c2_9 = arith.constant 2 : index
    %c0_10 = arith.constant 0 : index
    %15 = vector.load %arg1[%c2_9, %c0_10] : memref<8x128xf32, #tpu.memory_space<vmem>>, vector<1x128xf32>
    %16 = vector.broadcast %14 : vector<128x1xf32> to vector<128x128xf32>
    %17 = vector.broadcast %15 : vector<1x128xf32> to vector<128x128xf32>
    %18 = arith.mulf %16, %17 : vector<128x128xf32>
    %19 = arith.addf %13, %18 : vector<128x128xf32>
    %c0_11 = arith.constant 0 : index
    %c3 = arith.constant 3 : index
    %20 = vector.load %arg2[%c0_11, %c3] : memref<128x4xf32, #tpu.memory_space<vmem>>, vector<128x1xf32>
    %c3_12 = arith.constant 3 : index
    %c0_13 = arith.constant 0 : index
    %21 = vector.load %arg1[%c3_12, %c0_13] : memref<8x128xf32, #tpu.memory_space<vmem>>, vector<1x128xf32>
    %22 = vector.broadcast %20 : vector<128x1xf32> to vector<128x128xf32>
    %23 = vector.broadcast %21 : vector<1x128xf32> to vector<128x128xf32>
    %24 = arith.mulf %22, %23 : vector<128x128xf32>
    %25 = arith.addf %19, %24 : vector<128x128xf32>
    %cst = arith.constant 0.000000e+00 : f32
    %26 = vector.broadcast %cst : f32 to vector<128x128xf32>
    %27 = arith.maximumf %25, %26 : vector<128x128xf32>
    %c0_14 = arith.constant 0 : index
    %c0_15 = arith.constant 0 : index
    %28 = vector.load %arg4[%c0_14, %c0_15] : memref<512x128xbf16, #tpu.memory_space<vmem>>, vector<512x128xbf16>
    %29 = arith.truncf %27 : vector<128x128xf32> to vector<128x128xbf16>
    %cst_16 = arith.constant dense<0.000000e+00> : vector<512x128xf32>
    %30 = tpu.matmul %28, %29, %cst_16 {dimension_numbers = #tpu.dot_dimension_numbers<[1], [0], [0], [1], [0, 0, 1, 1], [], []>} : vector<512x128xbf16>, vector<128x128xbf16>, vector<512x128xf32> -> vector<512x128xf32>
    %c0_17 = arith.constant 0 : index
    %c0_18 = arith.constant 0 : index
    %31 = vector.load %arg5[%c0_17, %c0_18] : memref<512x1xf32, #tpu.memory_space<vmem>>, vector<512x1xf32>
    %32 = vector.broadcast %31 : vector<512x1xf32> to vector<512x128xf32>
    %33 = arith.addf %30, %32 : vector<512x128xf32>
    %cst_19 = arith.constant 0.000000e+00 : f32
    %34 = vector.broadcast %cst_19 : f32 to vector<512x128xf32>
    %35 = arith.maximumf %33, %34 : vector<512x128xf32>
    %c0_20 = arith.constant 0 : index
    %c0_21 = arith.constant 0 : index
    %36 = vector.load %arg6[%c0_20, %c0_21] : memref<8x512xbf16, #tpu.memory_space<vmem>>, vector<8x512xbf16>
    %37 = arith.truncf %35 : vector<512x128xf32> to vector<512x128xbf16>
    %cst_22 = arith.constant dense<0.000000e+00> : vector<8x128xf32>
    %38 = tpu.matmul %36, %37, %cst_22 {dimension_numbers = #tpu.dot_dimension_numbers<[1], [0], [0], [1], [0, 0, 1, 1], [], []>} : vector<8x512xbf16>, vector<512x128xbf16>, vector<8x128xf32> -> vector<8x128xf32>
    %c0_23 = arith.constant 0 : index
    %c0_24 = arith.constant 0 : index
    %39 = vector.load %arg7[%c0_23, %c0_24] : memref<8x1xf32, #tpu.memory_space<vmem>>, vector<8x1xf32>
    %40 = vector.broadcast %39 : vector<8x1xf32> to vector<8x128xf32>
    %41 = arith.addf %38, %40 : vector<8x128xf32>
    %c0_25 = arith.constant 0 : index
    %c0_26 = arith.constant 0 : index
    %42 = vector.load %arg8[%c0_25, %c0_26] : memref<8x128xf32, #tpu.memory_space<vmem>>, vector<8x128xf32>
    tpu.vector_store %arg8[%c0_25, %c0_26], %41 {strides = array<i32>} : memref<8x128xf32, #tpu.memory_space<vmem>>, vector<8x128xf32>,
    return
  }
  func.func @transform_0(%arg0: i32) -> (i32, i32) {
    %c0_i32 = arith.constant 0 : i32
    %c0_i32_0 = arith.constant 0 : i32
    return %c0_i32, %arg0 : i32, i32
  }
  func.func @transform_1(%arg0: i32) -> (i32, i32) {
    %c0_i32 = arith.constant 0 : i32
    %c0_i32_0 = arith.constant 0 : i32
    %c0_i32_1 = arith.constant 0 : i32
    return %c0_i32, %c0_i32_0 : i32, i32
  }
  func.func @transform_2(%arg0: i32) -> (i32, i32) {
    %c0_i32 = arith.constant 0 : i32
    %c0_i32_0 = arith.constant 0 : i32
    %c0_i32_1 = arith.constant 0 : i32
    return %c0_i32, %c0_i32_0 : i32, i32
  }
  func.func @transform_3(%arg0: i32) -> (i32, i32) {
    %c0_i32 = arith.constant 0 : i32
    %c0_i32_0 = arith.constant 0 : i32
    %c0_i32_1 = arith.constant 0 : i32
    return %c0_i32, %c0_i32_0 : i32, i32
  }
  func.func @transform_4(%arg0: i32) -> (i32, i32) {
    %c0_i32 = arith.constant 0 : i32
    %c0_i32_0 = arith.constant 0 : i32
    %c0_i32_1 = arith.constant 0 : i32
    return %c0_i32, %c0_i32_0 : i32, i32
  }
  func.func @transform_5(%arg0: i32) -> (i32, i32) {
    %c0_i32 = arith.constant 0 : i32
    %c0_i32_0 = arith.constant 0 : i32
    %c0_i32_1 = arith.constant 0 : i32
    return %c0_i32, %c0_i32_0 : i32, i32
  }
  func.func @transform_6(%arg0: i32) -> (i32, i32) {
    %c0_i32 = arith.constant 0 : i32
    %c0_i32_0 = arith.constant 0 : i32
    %c0_i32_1 = arith.constant 0 : i32
    return %c0_i32, %c0_i32_0 : i32, i32
  }
  func.func @transform_7(%arg0: i32) -> (i32, i32) {
    %c0_i32 = arith.constant 0 : i32
    %c0_i32_0 = arith.constant 0 : i32
    return %c0_i32, %arg0 : i32, i32
  }
}

</mosaic_0001>

<llo_original>
// kernel: tpu_custom_call.1
$region0: #{tpu_custom_call.1}
  #allocation0 [shape = 'u32[]', space=smem, size = 0x4, offset = 0x4, fixed_abs, tag = 'smem constant byte address 0x4 - core index']
  #allocation1 [shape = 'u32[144,128]{1,0:T(1,128)}', space=vmem, size = 0x12000, scoped, tag = 'internal scratch']
  %s0 = inlined_call_operand.vmem [shape: f32[8,128], index: 0, kind: input, shape index: {}]
  %s1 = inlined_call_operand.vmem [shape: f32[128,4], index: 1, kind: input, shape index: {}]
  %s2 = inlined_call_operand.vmem [shape: f32[128,1], index: 2, kind: input, shape index: {}]
  %s3 = inlined_call_operand.vmem [shape: bf16[512,128], index: 3, kind: input, shape index: {}]
  %s4 = inlined_call_operand.vmem [shape: f32[512,1], index: 4, kind: input, shape index: {}]
  %s5 = inlined_call_operand.vmem [shape: bf16[8,512], index: 5, kind: input, shape index: {}]
  %s6 = inlined_call_operand.vmem [shape: f32[8,1], index: 6, kind: input, shape index: {}]
  %s7 = inlined_call_operand.hbm [shape: f32[8,128], index: 7, kind: output, shape index: {}]
  %s8 = sld [smem:[#allocation0]]
  $region38: #{tpu_custom_call.1} parent=0
    _
  %s10 = ssub.s32 1, %s8
  %s11 = scalar_select 0, %s10, %s8
  $region1: #{tpu_custom_call.1} parent=0
    #allocation2 [shape = 'u8[4096]{0}', space=vmem, size = 0x1000, scoped, tag = 'output window, operand 0, single buffered']
    #allocation3 [shape = 's32[1]{0}', space=sflag, size = 0x4, scoped, tag = 'scoped memory for tpu_custom_call.1']
    %12 = vsyncpa [#allocation3], 0
    // Predicated region
    $region2: #{tpu_custom_call.1} parent=1 // pred_check
      _
    $region3: #{tpu_custom_call.1} parent=1 // pred_check_branch
      %14 = sbr.rel (0) target = $region5
    $region4: #{tpu_custom_call.1} parent=1 // pred_region
      _
    $region5: #{tpu_custom_call.1} parent=1 // pred_fallthru
      _
    // Predicated region
    $region6: #{tpu_custom_call.1} parent=1 // pred_check
      _
    $region7: #{tpu_custom_call.1} parent=1 // pred_check_branch
      %16 = sbr.rel (0) target = $region9
    $region8: #{tpu_custom_call.1} parent=1 // pred_region
      _
    $region9: #{tpu_custom_call.1} parent=1 // pred_fallthru
      _
    // Predicated region
    $region10: #{tpu_custom_call.1} parent=1 // pred_check
      _
    $region11: #{tpu_custom_call.1} parent=1 // pred_check_branch
      %18 = sbr.rel (0) target = $region13
    $region12: #{tpu_custom_call.1} parent=1 // pred_region
      _
    $region13: #{tpu_custom_call.1} parent=1 // pred_fallthru
      _
    // Predicated region
    $region14: #{tpu_custom_call.1} parent=1 // pred_check
      _
    $region15: #{tpu_custom_call.1} parent=1 // pred_check_branch
      %20 = sbr.rel (0) target = $region17
    $region16: #{tpu_custom_call.1} parent=1 // pred_region
      _
    $region17: #{tpu_custom_call.1} parent=1 // pred_fallthru
      _
    // Predicated region
    $region18: #{tpu_custom_call.1} parent=1 // pred_check
      _
    $region19: #{tpu_custom_call.1} parent=1 // pred_check_branch
      %22 = sbr.rel (0) target = $region21
    $region20: #{tpu_custom_call.1} parent=1 // pred_region
      _
    $region21: #{tpu_custom_call.1} parent=1 // pred_fallthru
      _
    // Predicated region
    $region22: #{tpu_custom_call.1} parent=1 // pred_check
      _
    $region23: #{tpu_custom_call.1} parent=1 // pred_check_branch
      %24 = sbr.rel (0) target = $region25
    $region24: #{tpu_custom_call.1} parent=1 // pred_region
      _
    $region25: #{tpu_custom_call.1} parent=1 // pred_fallthru
      _
    // Predicated region
    $region26: #{tpu_custom_call.1} parent=1 // pred_check
      _
    $region27: #{tpu_custom_call.1} parent=1 // pred_check_branch
      %26 = sbr.rel (0) target = $region29
    $region28: #{tpu_custom_call.1} parent=1 // pred_region
      _
    $region29: #{tpu_custom_call.1} parent=1 // pred_fallthru
      _
    %v28 = vld [vmem:[%s2] sm:$0xff]
    %v29 = vld [vmem:[%s2 + $0x8] sm:$0xff]
    %v30 = vld [vmem:[%s2 + $0x10] sm:$0xff]
    %v31 = vld [vmem:[%s2 + $0x18] sm:$0xff]
    %v32 = vld [vmem:[%s2 + $0x20] sm:$0xff]
    %v33 = vld [vmem:[%s2 + $0x28] sm:$0xff]
    %v34 = vld [vmem:[%s2 + $0x30] sm:$0xff]
    %v35 = vld [vmem:[%s2 + $0x38] sm:$0xff]
    %v36 = vld [vmem:[%s2 + $0x40] sm:$0xff]
    %v37 = vld [vmem:[%s2 + $0x48] sm:$0xff]
    %v38 = vld [vmem:[%s2 + $0x50] sm:$0xff]
    %v39 = vld [vmem:[%s2 + $0x58] sm:$0xff]
    %v40 = vld [vmem:[%s2 + $0x60] sm:$0xff]
    %v41 = vld [vmem:[%s2 + $0x68] sm:$0xff]
    %v42 = vld [vmem:[%s2 + $0x70] sm:$0xff]
    %v43 = vld [vmem:[%s2 + $0x78] sm:$0xff]
    %v44 = vld [vmem:[%s1] sm:$0xff]
    %v45 = vld [vmem:[%s1 + $0x8] sm:$0xff]
    %v46 = vld [vmem:[%s1 + $0x10] sm:$0xff]
    %v47 = vld [vmem:[%s1 + $0x18] sm:$0xff]
    %v48 = vld [vmem:[%s1 + $0x20] sm:$0xff]
    %v49 = vld [vmem:[%s1 + $0x28] sm:$0xff]
    %v50 = vld [vmem:[%s1 + $0x30] sm:$0xff]
    %v51 = vld [vmem:[%s1 + $0x38] sm:$0xff]
    %v52 = vld [vmem:[%s1 + $0x40] sm:$0xff]
    %v53 = vld [vmem:[%s1 + $0x48] sm:$0xff]
    %v54 = vld [vmem:[%s1 + $0x50] sm:$0xff]
    %v55 = vld [vmem:[%s1 + $0x58] sm:$0xff]
    %v56 = vld [vmem:[%s1 + $0x60] sm:$0xff]
    %v57 = vld [vmem:[%s1 + $0x68] sm:$0xff]
    %v58 = vld [vmem:[%s1 + $0x70] sm:$0xff]
    %v59 = vld [vmem:[%s1 + $0x78] sm:$0xff]
    %v60 = vld [vmem:[%s0] sm:$0x1]
    %62 = vset.pattern.permute.xlu0 0
    %63 = vperm.xlu0 %62, %v44
    %v64 = vpop.permute.xlu0 %63
    %67 = vset.pattern.permute.xlu0 0
    %68 = vperm.xlu0 %67, %v45
    %v69 = vpop.permute.xlu0 %68
    %72 = vset.pattern.permute.xlu0 0
    %73 = vperm.xlu0 %72, %v46
    %v74 = vpop.permute.xlu0 %73
    %77 = vset.pattern.permute.xlu0 0
    %78 = vperm.xlu0 %77, %v47
    %v79 = vpop.permute.xlu0 %78
    %82 = vset.pattern.permute.xlu0 0
    %83 = vperm.xlu0 %82, %v48
    %v84 = vpop.permute.xlu0 %83
    %87 = vset.pattern.permute.xlu0 0
    %88 = vperm.xlu0 %87, %v49
    %v89 = vpop.permute.xlu0 %88
    %92 = vset.pattern.permute.xlu0 0
    %93 = vperm.xlu0 %92, %v50
    %v94 = vpop.permute.xlu0 %93
    %97 = vset.pattern.permute.xlu0 0
    %98 = vperm.xlu0 %97, %v51
    %v99 = vpop.permute.xlu0 %98
    %102 = vset.pattern.permute.xlu0 0
    %103 = vperm.xlu0 %102, %v52
    %v104 = vpop.permute.xlu0 %103
    %107 = vset.pattern.permute.xlu0 0
    %108 = vperm.xlu0 %107, %v53
    %v109 = vpop.permute.xlu0 %108
    %112 = vset.pattern.permute.xlu0 0
    %113 = vperm.xlu0 %112, %v54
    %v114 = vpop.permute.xlu0 %113
    %117 = vset.pattern.permute.xlu0 0
    %118 = vperm.xlu0 %117, %v55
    %v119 = vpop.permute.xlu0 %118
    %122 = vset.pattern.permute.xlu0 0
    %123 = vperm.xlu0 %122, %v56
    %v124 = vpop.permute.xlu0 %123
    %127 = vset.pattern.permute.xlu0 0
    %128 = vperm.xlu0 %127, %v57
    %v129 = vpop.permute.xlu0 %128
    %132 = vset.pattern.permute.xlu0 0
    %133 = vperm.xlu0 %132, %v58
    %v134 = vpop.permute.xlu0 %133
    %137 = vset.pattern.permute.xlu0 0
    %138 = vperm.xlu0 %137, %v59
    %v139 = vpop.permute.xlu0 %138
    %v141 = vlaneseq
    %v142 = vshrl.u32 %v141, 7
    %v143 = vsub.s32 0, %v142
    %v144 = vrot.slane %v60, %v143
    %v145 = vmul.f32 %v64, %v144
    %v146 = vmul.f32 %v69, %v144
    %v147 = vmul.f32 %v74, %v144
    %v148 = vmul.f32 %v79, %v144
    %v149 = vmul.f32 %v84, %v144
    %v150 = vmul.f32 %v89, %v144
    %v151 = vmul.f32 %v94, %v144
    %v152 = vmul.f32 %v99, %v144
    %v153 = vmul.f32 %v104, %v144
    %v154 = vmul.f32 %v109, %v144
    %v155 = vmul.f32 %v114, %v144
    %v156 = vmul.f32 %v119, %v144
    %v157 = vmul.f32 %v124, %v144
    %v158 = vmul.f32 %v129, %v144
    %v159 = vmul.f32 %v134, %v144
    %v160 = vmul.f32 %v139, %v144
    %162 = vset.pattern.permute.xlu0 0
    %163 = vperm.xlu0 %162, %v28
    %v164 = vpop.permute.xlu0 %163
    %167 = vset.pattern.permute.xlu0 0
    %168 = vperm.xlu0 %167, %v29
    %v169 = vpop.permute.xlu0 %168
    %172 = vset.pattern.permute.xlu0 0
    %173 = vperm.xlu0 %172, %v30
    %v174 = vpop.permute.xlu0 %173
    %177 = vset.pattern.permute.xlu0 0
    %178 = vperm.xlu0 %177, %v31
    %v179 = vpop.permute.xlu0 %178
    %182 = vset.pattern.permute.xlu0 0
    %183 = vperm.xlu0 %182, %v32
    %v184 = vpop.permute.xlu0 %183
    %187 = vset.pattern.permute.xlu0 0
    %188 = vperm.xlu0 %187, %v33
    %v189 = vpop.permute.xlu0 %188
    %192 = vset.pattern.permute.xlu0 0
    %193 = vperm.xlu0 %192, %v34
    %v194 = vpop.permute.xlu0 %193
    %197 = vset.pattern.permute.xlu0 0
    %198 = vperm.xlu0 %197, %v35
    %v199 = vpop.permute.xlu0 %198
    %202 = vset.pattern.permute.xlu0 0
    %203 = vperm.xlu0 %202, %v36
    %v204 = vpop.permute.xlu0 %203
    %207 = vset.pattern.permute.xlu0 0
    %208 = vperm.xlu0 %207, %v37
    %v209 = vpop.permute.xlu0 %208
    %212 = vset.pattern.permute.xlu0 0
    %213 = vperm.xlu0 %212, %v38
    %v214 = vpop.permute.xlu0 %213
    %217 = vset.pattern.permute.xlu0 0
    %218 = vperm.xlu0 %217, %v39
    %v219 = vpop.permute.xlu0 %218
    %222 = vset.pattern.permute.xlu0 0
    %223 = vperm.xlu0 %222, %v40
    %v224 = vpop.permute.xlu0 %223
    %227 = vset.pattern.permute.xlu0 0
    %228 = vperm.xlu0 %227, %v41
    %v229 = vpop.permute.xlu0 %228
    %232 = vset.pattern.permute.xlu0 0
    %233 = vperm.xlu0 %232, %v42
    %v234 = vpop.permute.xlu0 %233
    %237 = vset.pattern.permute.xlu0 0
    %238 = vperm.xlu0 %237, %v43
    %v239 = vpop.permute.xlu0 %238
    %v241 = vadd.f32 %v164, %v145
    %v242 = vadd.f32 %v169, %v146
    %v243 = vadd.f32 %v174, %v147
    %v244 = vadd.f32 %v179, %v148
    %v245 = vadd.f32 %v184, %v149
    %v246 = vadd.f32 %v189, %v150
    %v247 = vadd.f32 %v194, %v151
    %v248 = vadd.f32 %v199, %v152
    %v249 = vadd.f32 %v204, %v153
    %v250 = vadd.f32 %v209, %v154
    %v251 = vadd.f32 %v214, %v155
    %v252 = vadd.f32 %v219, %v156
    %v253 = vadd.f32 %v224, %v157
    %v254 = vadd.f32 %v229, %v158
    %v255 = vadd.f32 %v234, %v159
    %v256 = vadd.f32 %v239, %v160
    %v257 = vld [vmem:[%s0 + $0x1] sm:$0x1]
    %258 = vset.pattern.permute.xlu0 1
    %259 = vperm.xlu0 %258, %v44
    %v260 = vpop.permute.xlu0 %259
    %262 = vset.pattern.permute.xlu0 1
    %263 = vperm.xlu0 %262, %v45
    %v264 = vpop.permute.xlu0 %263
    %266 = vset.pattern.permute.xlu0 1
    %267 = vperm.xlu0 %266, %v46
    %v268 = vpop.permute.xlu0 %267
    %270 = vset.pattern.permute.xlu0 1
    %271 = vperm.xlu0 %270, %v47
    %v272 = vpop.permute.xlu0 %271
    %274 = vset.pattern.permute.xlu0 1
    %275 = vperm.xlu0 %274, %v48
    %v276 = vpop.permute.xlu0 %275
    %278 = vset.pattern.permute.xlu0 1
    %279 = vperm.xlu0 %278, %v49
    %v280 = vpop.permute.xlu0 %279
    %282 = vset.pattern.permute.xlu0 1
    %283 = vperm.xlu0 %282, %v50
    %v284 = vpop.permute.xlu0 %283
    %286 = vset.pattern.permute.xlu0 1
    %287 = vperm.xlu0 %286, %v51
    %v288 = vpop.permute.xlu0 %287
    %290 = vset.pattern.permute.xlu0 1
    %291 = vperm.xlu0 %290, %v52
    %v292 = vpop.permute.xlu0 %291
    %294 = vset.pattern.permute.xlu0 1
    %295 = vperm.xlu0 %294, %v53
    %v296 = vpop.permute.xlu0 %295
    %298 = vset.pattern.permute.xlu0 1
    %299 = vperm.xlu0 %298, %v54
    %v300 = vpop.permute.xlu0 %299
    %302 = vset.pattern.permute.xlu0 1
    %303 = vperm.xlu0 %302, %v55
    %v304 = vpop.permute.xlu0 %303
    %306 = vset.pattern.permute.xlu0 1
    %307 = vperm.xlu0 %306, %v56
    %v308 = vpop.permute.xlu0 %307
    %310 = vset.pattern.permute.xlu0 1
    %311 = vperm.xlu0 %310, %v57
    %v312 = vpop.permute.xlu0 %311
    %314 = vset.pattern.permute.xlu0 1
    %315 = vperm.xlu0 %314, %v58
    %v316 = vpop.permute.xlu0 %315
    %318 = vset.pattern.permute.xlu0 1
    %319 = vperm.xlu0 %318, %v59
    %v320 = vpop.permute.xlu0 %319
    %v322 = vlaneseq
    %v323 = vshrl.u32 %v322, 7
    %v324 = vsub.s32 0, %v323
    %v325 = vrot.slane %v257, %v324
    %v326 = vmul.f32 %v260, %v325
    %v327 = vmul.f32 %v264, %v325
    %v328 = vmul.f32 %v268, %v325
    %v329 = vmul.f32 %v272, %v325
    %v330 = vmul.f32 %v276, %v325
    %v331 = vmul.f32 %v280, %v325
    %v332 = vmul.f32 %v284, %v325
    %v333 = vmul.f32 %v288, %v325
    %v334 = vmul.f32 %v292, %v325
    %v335 = vmul.f32 %v296, %v325
    %v336 = vmul.f32 %v300, %v325
    %v337 = vmul.f32 %v304, %v325
    %v338 = vmul.f32 %v308, %v325
    %v339 = vmul.f32 %v312, %v325
    %v340 = vmul.f32 %v316, %v325
    %v341 = vmul.f32 %v320, %v325
    %v342 = vadd.f32 %v241, %v326
    %v343 = vadd.f32 %v242, %v327
    %v344 = vadd.f32 %v243, %v328
    %v345 = vadd.f32 %v244, %v329
    %v346 = vadd.f32 %v245, %v330
    %v347 = vadd.f32 %v246, %v331
    %v348 = vadd.f32 %v247, %v332
    %v349 = vadd.f32 %v248, %v333
    %v350 = vadd.f32 %v249, %v334
    %v351 = vadd.f32 %v250, %v335
    %v352 = vadd.f32 %v251, %v336
    %v353 = vadd.f32 %v252, %v337
    %v354 = vadd.f32 %v253, %v338
    %v355 = vadd.f32 %v254, %v339
    %v356 = vadd.f32 %v255, %v340
    %v357 = vadd.f32 %v256, %v341
    %v358 = vld [vmem:[%s0 + $0x2] sm:$0x1]
    %359 = vset.pattern.permute.xlu0 2
    %360 = vperm.xlu0 %359, %v44
    %v361 = vpop.permute.xlu0 %360
    %363 = vset.pattern.permute.xlu0 2
    %364 = vperm.xlu0 %363, %v45
    %v365 = vpop.permute.xlu0 %364
    %367 = vset.pattern.permute.xlu0 2
    %368 = vperm.xlu0 %367, %v46
    %v369 = vpop.permute.xlu0 %368
    %371 = vset.pattern.permute.xlu0 2
    %372 = vperm.xlu0 %371, %v47
    %v373 = vpop.permute.xlu0 %372
    %375 = vset.pattern.permute.xlu0 2
    %376 = vperm.xlu0 %375, %v48
    %v377 = vpop.permute.xlu0 %376
    %379 = vset.pattern.permute.xlu0 2
    %380 = vperm.xlu0 %379, %v49
    %v381 = vpop.permute.xlu0 %380
    %383 = vset.pattern.permute.xlu0 2
    %384 = vperm.xlu0 %383, %v50
    %v385 = vpop.permute.xlu0 %384
    %387 = vset.pattern.permute.xlu0 2
    %388 = vperm.xlu0 %387, %v51
    %v389 = vpop.permute.xlu0 %388
    %391 = vset.pattern.permute.xlu0 2
    %392 = vperm.xlu0 %391, %v52
    %v393 = vpop.permute.xlu0 %392
    %395 = vset.pattern.permute.xlu0 2
    %396 = vperm.xlu0 %395, %v53
    %v397 = vpop.permute.xlu0 %396
    %399 = vset.pattern.permute.xlu0 2
    %400 = vperm.xlu0 %399, %v54
    %v401 = vpop.permute.xlu0 %400
    %403 = vset.pattern.permute.xlu0 2
    %404 = vperm.xlu0 %403, %v55
    %v405 = vpop.permute.xlu0 %404
    %407 = vset.pattern.permute.xlu0 2
    %408 = vperm.xlu0 %407, %v56
    %v409 = vpop.permute.xlu0 %408
    %411 = vset.pattern.permute.xlu0 2
    %412 = vperm.xlu0 %411, %v57
    %v413 = vpop.permute.xlu0 %412
    %415 = vset.pattern.permute.xlu0 2
    %416 = vperm.xlu0 %415, %v58
    %v417 = vpop.permute.xlu0 %416
    %419 = vset.pattern.permute.xlu0 2
    %420 = vperm.xlu0 %419, %v59
    %v421 = vpop.permute.xlu0 %420
    %v423 = vlaneseq
    %v424 = vshrl.u32 %v423, 7
    %v425 = vsub.s32 0, %v424
    %v426 = vrot.slane %v358, %v425
    %v427 = vmul.f32 %v361, %v426
    %v428 = vmul.f32 %v365, %v426
    %v429 = vmul.f32 %v369, %v426
    %v430 = vmul.f32 %v373, %v426
    %v431 = vmul.f32 %v377, %v426
    %v432 = vmul.f32 %v381, %v426
    %v433 = vmul.f32 %v385, %v426
    %v434 = vmul.f32 %v389, %v426
    %v435 = vmul.f32 %v393, %v426
    %v436 = vmul.f32 %v397, %v426
    %v437 = vmul.f32 %v401, %v426
    %v438 = vmul.f32 %v405, %v426
    %v439 = vmul.f32 %v409, %v426
    %v440 = vmul.f32 %v413, %v426
    %v441 = vmul.f32 %v417, %v426
    %v442 = vmul.f32 %v421, %v426
    %v443 = vadd.f32 %v342, %v427
    %v444 = vadd.f32 %v343, %v428
    %v445 = vadd.f32 %v344, %v429
    %v446 = vadd.f32 %v345, %v430
    %v447 = vadd.f32 %v346, %v431
    %v448 = vadd.f32 %v347, %v432
    %v449 = vadd.f32 %v348, %v433
    %v450 = vadd.f32 %v349, %v434
    %v451 = vadd.f32 %v350, %v435
    %v452 = vadd.f32 %v351, %v436
    %v453 = vadd.f32 %v352, %v437
    %v454 = vadd.f32 %v353, %v438
    %v455 = vadd.f32 %v354, %v439
    %v456 = vadd.f32 %v355, %v440
    %v457 = vadd.f32 %v356, %v441
    %v458 = vadd.f32 %v357, %v442
    %v459 = vld [vmem:[%s0 + $0x3] sm:$0x1]
    %460 = vset.pattern.permute.xlu0 3
    %461 = vperm.xlu0 %460, %v44
    %v462 = vpop.permute.xlu0 %461
    %464 = vset.pattern.permute.xlu0 3
    %465 = vperm.xlu0 %464, %v45
    %v466 = vpop.permute.xlu0 %465
    %468 = vset.pattern.permute.xlu0 3
    %469 = vperm.xlu0 %468, %v46
    %v470 = vpop.permute.xlu0 %469
    %472 = vset.pattern.permute.xlu0 3
    %473 = vperm.xlu0 %472, %v47
    %v474 = vpop.permute.xlu0 %473
    %476 = vset.pattern.permute.xlu0 3
    %477 = vperm.xlu0 %476, %v48
    %v478 = vpop.permute.xlu0 %477
    %480 = vset.pattern.permute.xlu0 3
    %481 = vperm.xlu0 %480, %v49
    %v482 = vpop.permute.xlu0 %481
    %484 = vset.pattern.permute.xlu0 3
    %485 = vperm.xlu0 %484, %v50
    %v486 = vpop.permute.xlu0 %485
    %488 = vset.pattern.permute.xlu0 3
    %489 = vperm.xlu0 %488, %v51
    %v490 = vpop.permute.xlu0 %489
    %492 = vset.pattern.permute.xlu0 3
    %493 = vperm.xlu0 %492, %v52
    %v494 = vpop.permute.xlu0 %493
    %496 = vset.pattern.permute.xlu0 3
    %497 = vperm.xlu0 %496, %v53
    %v498 = vpop.permute.xlu0 %497
    %500 = vset.pattern.permute.xlu0 3
    %501 = vperm.xlu0 %500, %v54
    %v502 = vpop.permute.xlu0 %501
    %504 = vset.pattern.permute.xlu0 3
    %505 = vperm.xlu0 %504, %v55
    %v506 = vpop.permute.xlu0 %505
    %508 = vset.pattern.permute.xlu0 3
    %509 = vperm.xlu0 %508, %v56
    %v510 = vpop.permute.xlu0 %509
    %512 = vset.pattern.permute.xlu0 3
    %513 = vperm.xlu0 %512, %v57
    %v514 = vpop.permute.xlu0 %513
    %516 = vset.pattern.permute.xlu0 3
    %517 = vperm.xlu0 %516, %v58
    %v518 = vpop.permute.xlu0 %517
    %520 = vset.pattern.permute.xlu0 3
    %521 = vperm.xlu0 %520, %v59
    %v522 = vpop.permute.xlu0 %521
    %v524 = vlaneseq
    %v525 = vshrl.u32 %v524, 7
    %v526 = vsub.s32 0, %v525
    %v527 = vrot.slane %v459, %v526
    %v528 = vmul.f32 %v462, %v527
    %v529 = vmul.f32 %v466, %v527
    %v530 = vmul.f32 %v470, %v527
    %v531 = vmul.f32 %v474, %v527
    %v532 = vmul.f32 %v478, %v527
    %v533 = vmul.f32 %v482, %v527
    %v534 = vmul.f32 %v486, %v527
    %v535 = vmul.f32 %v490, %v527
    %v536 = vmul.f32 %v494, %v527
    %v537 = vmul.f32 %v498, %v527
    %v538 = vmul.f32 %v502, %v527
    %v539 = vmul.f32 %v506, %v527
    %v540 = vmul.f32 %v510, %v527
    %v541 = vmul.f32 %v514, %v527
    %v542 = vmul.f32 %v518, %v527
    %v543 = vmul.f32 %v522, %v527
    %v544 = vadd.f32 %v443, %v528
    %v545 = vadd.f32 %v444, %v529
    %v546 = vadd.f32 %v445, %v530
    %v547 = vadd.f32 %v446, %v531
    %v548 = vadd.f32 %v447, %v532
    %v549 = vadd.f32 %v448, %v533
    %v550 = vadd.f32 %v449, %v534
    %v551 = vadd.f32 %v450, %v535
    %v552 = vadd.f32 %v451, %v536
    %v553 = vadd.f32 %v452, %v537
    %v554 = vadd.f32 %v453, %v538
    %v555 = vadd.f32 %v454, %v539
    %v556 = vadd.f32 %v455, %v540
    %v557 = vadd.f32 %v456, %v541
    %v558 = vadd.f32 %v457, %v542
    %v559 = vadd.f32 %v458, %v543
    %v560 = vmax.f32 %v544, 0.0
    %v561 = vmax.f32 %v545, 0.0
    %v562 = vmax.f32 %v546, 0.0
    %v563 = vmax.f32 %v547, 0.0
    %v564 = vmax.f32 %v548, 0.0
    %v565 = vmax.f32 %v549, 0.0
    %v566 = vmax.f32 %v550, 0.0
    %v567 = vmax.f32 %v551, 0.0
    %v568 = vmax.f32 %v552, 0.0
    %v569 = vmax.f32 %v553, 0.0
    %v570 = vmax.f32 %v554, 0.0
    %v571 = vmax.f32 %v555, 0.0
    %v572 = vmax.f32 %v556, 0.0
    %v573 = vmax.f32 %v557, 0.0
    %v574 = vmax.f32 %v558, 0.0
    %v575 = vmax.f32 %v559, 0.0
    %v576 = vld [vmem:[%s3] sm:$0xf]
    %v577 = vld [vmem:[%s3 + $0x4] sm:$0xf]
    %v578 = vld [vmem:[%s3 + $0x8] sm:$0xf]
    %v579 = vld [vmem:[%s3 + $0xc] sm:$0xf]
    %v580 = vld [vmem:[%s3 + $0x10] sm:$0xf]
    %v581 = vld [vmem:[%s3 + $0x14] sm:$0xf]
    %v582 = vld [vmem:[%s3 + $0x18] sm:$0xf]
    %v583 = vld [vmem:[%s3 + $0x1c] sm:$0xf]
    %v584 = vld [vmem:[%s3 + $0x20] sm:$0xf]
    %v585 = vld [vmem:[%s3 + $0x24] sm:$0xf]
    %v586 = vld [vmem:[%s3 + $0x28] sm:$0xf]
    %v587 = vld [vmem:[%s3 + $0x2c] sm:$0xf]
    %v588 = vld [vmem:[%s3 + $0x30] sm:$0xf]
    %v589 = vld [vmem:[%s3 + $0x34] sm:$0xf]
    %v590 = vld [vmem:[%s3 + $0x38] sm:$0xf]
    %v591 = vld [vmem:[%s3 + $0x3c] sm:$0xf]
    %v592 = vld [vmem:[%s3 + $0x40] sm:$0xf]
    %v593 = vld [vmem:[%s3 + $0x44] sm:$0xf]
    %v594 = vld [vmem:[%s3 + $0x48] sm:$0xf]
    %v595 = vld [vmem:[%s3 + $0x4c] sm:$0xf]
    %v596 = vld [vmem:[%s3 + $0x50] sm:$0xf]
    %v597 = vld [vmem:[%s3 + $0x54] sm:$0xf]
    %v598 = vld [vmem:[%s3 + $0x58] sm:$0xf]
    %v599 = vld [vmem:[%s3 + $0x5c] sm:$0xf]
    %v600 = vld [vmem:[%s3 + $0x60] sm:$0xf]
    %v601 = vld [vmem:[%s3 + $0x64] sm:$0xf]
    %v602 = vld [vmem:[%s3 + $0x68] sm:$0xf]
    %v603 = vld [vmem:[%s3 + $0x6c] sm:$0xf]
    %v604 = vld [vmem:[%s3 + $0x70] sm:$0xf]
    %v605 = vld [vmem:[%s3 + $0x74] sm:$0xf]
    %v606 = vld [vmem:[%s3 + $0x78] sm:$0xf]
    %v607 = vld [vmem:[%s3 + $0x7c] sm:$0xf]
    %v608 = vld [vmem:[%s3 + $0x80] sm:$0xf]
    %v609 = vld [vmem:[%s3 + $0x84] sm:$0xf]
    %v610 = vld [vmem:[%s3 + $0x88] sm:$0xf]
    %v611 = vld [vmem:[%s3 + $0x8c] sm:$0xf]
    %v612 = vld [vmem:[%s3 + $0x90] sm:$0xf]
    %v613 = vld [vmem:[%s3 + $0x94] sm:$0xf]
    %v614 = vld [vmem:[%s3 + $0x98] sm:$0xf]
    %v615 = vld [vmem:[%s3 + $0x9c] sm:$0xf]
    %v616 = vld [vmem:[%s3 + $0xa0] sm:$0xf]
    %v617 = vld [vmem:[%s3 + $0xa4] sm:$0xf]
    %v618 = vld [vmem:[%s3 + $0xa8] sm:$0xf]
    %v619 = vld [vmem:[%s3 + $0xac] sm:$0xf]
    %v620 = vld [vmem:[%s3 + $0xb0] sm:$0xf]
    %v621 = vld [vmem:[%s3 + $0xb4] sm:$0xf]
    %v622 = vld [vmem:[%s3 + $0xb8] sm:$0xf]
    %v623 = vld [vmem:[%s3 + $0xbc] sm:$0xf]
    %v624 = vld [vmem:[%s3 + $0xc0] sm:$0xf]
    %v625 = vld [vmem:[%s3 + $0xc4] sm:$0xf]
    %v626 = vld [vmem:[%s3 + $0xc8] sm:$0xf]
    %v627 = vld [vmem:[%s3 + $0xcc] sm:$0xf]
    %v628 = vld [vmem:[%s3 + $0xd0] sm:$0xf]
    %v629 = vld [vmem:[%s3 + $0xd4] sm:$0xf]
    %v630 = vld [vmem:[%s3 + $0xd8] sm:$0xf]
    %v631 = vld [vmem:[%s3 + $0xdc] sm:$0xf]
    %v632 = vld [vmem:[%s3 + $0xe0] sm:$0xf]
    %v633 = vld [vmem:[%s3 + $0xe4] sm:$0xf]
    %v634 = vld [vmem:[%s3 + $0xe8] sm:$0xf]
    %v635 = vld [vmem:[%s3 + $0xec] sm:$0xf]
    %v636 = vld [vmem:[%s3 + $0xf0] sm:$0xf]
    %v637 = vld [vmem:[%s3 + $0xf4] sm:$0xf]
    %v638 = vld [vmem:[%s3 + $0xf8] sm:$0xf]
    %v639 = vld [vmem:[%s3 + $0xfc] sm:$0xf]
    %v640 = vpack.c.bf16 %v561, %v560
    %v641 = vpack.c.bf16 %v563, %v562
    %v642 = vpack.c.bf16 %v565, %v564
    %v643 = vpack.c.bf16 %v567, %v566
    %v644 = vpack.c.bf16 %v569, %v568
    %v645 = vpack.c.bf16 %v571, %v570
    %v646 = vpack.c.bf16 %v573, %v572
    %v647 = vpack.c.bf16 %v575, %v574
    %v648 = vld [vmem:[%s4] sm:$0xff]
    %v649 = vld [vmem:[%s4 + $0x8] sm:$0xff]
    %v650 = vld [vmem:[%s4 + $0x10] sm:$0xff]
    %v651 = vld [vmem:[%s4 + $0x18] sm:$0xff]
    %v652 = vld [vmem:[%s4 + $0x20] sm:$0xff]
    %v653 = vld [vmem:[%s4 + $0x28] sm:$0xff]
    %v654 = vld [vmem:[%s4 + $0x30] sm:$0xff]
    %v655 = vld [vmem:[%s4 + $0x38] sm:$0xff]
    %v656 = vld [vmem:[%s4 + $0x40] sm:$0xff]
    %v657 = vld [vmem:[%s4 + $0x48] sm:$0xff]
    %v658 = vld [vmem:[%s4 + $0x50] sm:$0xff]
    %v659 = vld [vmem:[%s4 + $0x58] sm:$0xff]
    %v660 = vld [vmem:[%s4 + $0x60] sm:$0xff]
    %v661 = vld [vmem:[%s4 + $0x68] sm:$0xff]
    %v662 = vld [vmem:[%s4 + $0x70] sm:$0xff]
    %v663 = vld [vmem:[%s4 + $0x78] sm:$0xff]
    %v664 = vld [vmem:[%s4 + $0x80] sm:$0xff]
    %v665 = vld [vmem:[%s4 + $0x88] sm:$0xff]
    %v666 = vld [vmem:[%s4 + $0x90] sm:$0xff]
    %v667 = vld [vmem:[%s4 + $0x98] sm:$0xff]
    %v668 = vld [vmem:[%s4 + $0xa0] sm:$0xff]
    %v669 = vld [vmem:[%s4 + $0xa8] sm:$0xff]
    %v670 = vld [vmem:[%s4 + $0xb0] sm:$0xff]
    %v671 = vld [vmem:[%s4 + $0xb8] sm:$0xff]
    %v672 = vld [vmem:[%s4 + $0xc0] sm:$0xff]
    %v673 = vld [vmem:[%s4 + $0xc8] sm:$0xff]
    %v674 = vld [vmem:[%s4 + $0xd0] sm:$0xff]
    %v675 = vld [vmem:[%s4 + $0xd8] sm:$0xff]
    %v676 = vld [vmem:[%s4 + $0xe0] sm:$0xff]
    %v677 = vld [vmem:[%s4 + $0xe8] sm:$0xff]
    %v678 = vld [vmem:[%s4 + $0xf0] sm:$0xff]
    %v679 = vld [vmem:[%s4 + $0xf8] sm:$0xff]
    %v680 = vld [vmem:[%s4 + $0x100] sm:$0xff]
    %v681 = vld [vmem:[%s4 + $0x108] sm:$0xff]
    %v682 = vld [vmem:[%s4 + $0x110] sm:$0xff]
    %v683 = vld [vmem:[%s4 + $0x118] sm:$0xff]
    %v684 = vld [vmem:[%s4 + $0x120] sm:$0xff]
    %v685 = vld [vmem:[%s4 + $0x128] sm:$0xff]
    %v686 = vld [vmem:[%s4 + $0x130] sm:$0xff]
    %v687 = vld [vmem:[%s4 + $0x138] sm:$0xff]
    %v688 = vld [vmem:[%s4 + $0x140] sm:$0xff]
    %v689 = vld [vmem:[%s4 + $0x148] sm:$0xff]
    %v690 = vld [vmem:[%s4 + $0x150] sm:$0xff]
    %v691 = vld [vmem:[%s4 + $0x158] sm:$0xff]
    %v692 = vld [vmem:[%s4 + $0x160] sm:$0xff]
    %v693 = vld [vmem:[%s4 + $0x168] sm:$0xff]
    %v694 = vld [vmem:[%s4 + $0x170] sm:$0xff]
    %v695 = vld [vmem:[%s4 + $0x178] sm:$0xff]
    %v696 = vld [vmem:[%s4 + $0x180] sm:$0xff]
    %v697 = vld [vmem:[%s4 + $0x188] sm:$0xff]
    %v698 = vld [vmem:[%s4 + $0x190] sm:$0xff]
    %v699 = vld [vmem:[%s4 + $0x198] sm:$0xff]
    %v700 = vld [vmem:[%s4 + $0x1a0] sm:$0xff]
    %v701 = vld [vmem:[%s4 + $0x1a8] sm:$0xff]
    %v702 = vld [vmem:[%s4 + $0x1b0] sm:$0xff]
    %v703 = vld [vmem:[%s4 + $0x1b8] sm:$0xff]
    %v704 = vld [vmem:[%s4 + $0x1c0] sm:$0xff]
    %v705 = vld [vmem:[%s4 + $0x1c8] sm:$0xff]
    %v706 = vld [vmem:[%s4 + $0x1d0] sm:$0xff]
    %v707 = vld [vmem:[%s4 + $0x1d8] sm:$0xff]
    %v708 = vld [vmem:[%s4 + $0x1e0] sm:$0xff]
    %v709 = vld [vmem:[%s4 + $0x1e8] sm:$0xff]
    %v710 = vld [vmem:[%s4 + $0x1f0] sm:$0xff]
    %v711 = vld [vmem:[%s4 + $0x1f8] sm:$0xff]
    %713 = vset.pattern.permute.xlu0 0
    %714 = vperm.xlu0 %713, %v648
    %v715 = vpop.permute.xlu0 %714
    %718 = vset.pattern.permute.xlu0 0
    %719 = vperm.xlu0 %718, %v649
    %v720 = vpop.permute.xlu0 %719
    %723 = vset.pattern.permute.xlu0 0
    %724 = vperm.xlu0 %723, %v650
    %v725 = vpop.permute.xlu0 %724
    %728 = vset.pattern.permute.xlu0 0
    %729 = vperm.xlu0 %728, %v651
    %v730 = vpop.permute.xlu0 %729
    %733 = vset.pattern.permute.xlu0 0
    %734 = vperm.xlu0 %733, %v652
    %v735 = vpop.permute.xlu0 %734
    %738 = vset.pattern.permute.xlu0 0
    %739 = vperm.xlu0 %738, %v653
    %v740 = vpop.permute.xlu0 %739
    %743 = vset.pattern.permute.xlu0 0
    %744 = vperm.xlu0 %743, %v654
    %v745 = vpop.permute.xlu0 %744
    %748 = vset.pattern.permute.xlu0 0
    %749 = vperm.xlu0 %748, %v655
    %v750 = vpop.permute.xlu0 %749
    %753 = vset.pattern.permute.xlu0 0
    %754 = vperm.xlu0 %753, %v656
    %v755 = vpop.permute.xlu0 %754
    %758 = vset.pattern.permute.xlu0 0
    %759 = vperm.xlu0 %758, %v657
    %v760 = vpop.permute.xlu0 %759
    %763 = vset.pattern.permute.xlu0 0
    %764 = vperm.xlu0 %763, %v658
    %v765 = vpop.permute.xlu0 %764
    %768 = vset.pattern.permute.xlu0 0
    %769 = vperm.xlu0 %768, %v659
    %v770 = vpop.permute.xlu0 %769
    %773 = vset.pattern.permute.xlu0 0
    %774 = vperm.xlu0 %773, %v660
    %v775 = vpop.permute.xlu0 %774
    %778 = vset.pattern.permute.xlu0 0
    %779 = vperm.xlu0 %778, %v661
    %v780 = vpop.permute.xlu0 %779
    %783 = vset.pattern.permute.xlu0 0
    %784 = vperm.xlu0 %783, %v662
    %v785 = vpop.permute.xlu0 %784
    %788 = vset.pattern.permute.xlu0 0
    %789 = vperm.xlu0 %788, %v663
    %v790 = vpop.permute.xlu0 %789
    %793 = vset.pattern.permute.xlu0 0
    %794 = vperm.xlu0 %793, %v664
    %v795 = vpop.permute.xlu0 %794
    %798 = vset.pattern.permute.xlu0 0
    %799 = vperm.xlu0 %798, %v665
    %v800 = vpop.permute.xlu0 %799
    %803 = vset.pattern.permute.xlu0 0
    %804 = vperm.xlu0 %803, %v666
    %v805 = vpop.permute.xlu0 %804
    %808 = vset.pattern.permute.xlu0 0
    %809 = vperm.xlu0 %808, %v667
    %v810 = vpop.permute.xlu0 %809
    %813 = vset.pattern.permute.xlu0 0
    %814 = vperm.xlu0 %813, %v668
    %v815 = vpop.permute.xlu0 %814
    %818 = vset.pattern.permute.xlu0 0
    %819 = vperm.xlu0 %818, %v669
    %v820 = vpop.permute.xlu0 %819
    %823 = vset.pattern.permute.xlu0 0
    %824 = vperm.xlu0 %823, %v670
    %v825 = vpop.permute.xlu0 %824
    %828 = vset.pattern.permute.xlu0 0
    %829 = vperm.xlu0 %828, %v671
    %v830 = vpop.permute.xlu0 %829
    %833 = vset.pattern.permute.xlu0 0
    %834 = vperm.xlu0 %833, %v672
    %v835 = vpop.permute.xlu0 %834
    %838 = vset.pattern.permute.xlu0 0
    %839 = vperm.xlu0 %838, %v673
    %v840 = vpop.permute.xlu0 %839
    %843 = vset.pattern.permute.xlu0 0
    %844 = vperm.xlu0 %843, %v674
    %v845 = vpop.permute.xlu0 %844
    %848 = vset.pattern.permute.xlu0 0
    %849 = vperm.xlu0 %848, %v675
    %v850 = vpop.permute.xlu0 %849
    %853 = vset.pattern.permute.xlu0 0
    %854 = vperm.xlu0 %853, %v676
    %v855 = vpop.permute.xlu0 %854
    %858 = vset.pattern.permute.xlu0 0
    %859 = vperm.xlu0 %858, %v677
    %v860 = vpop.permute.xlu0 %859
    %863 = vset.pattern.permute.xlu0 0
    %864 = vperm.xlu0 %863, %v678
    %v865 = vpop.permute.xlu0 %864
    %868 = vset.pattern.permute.xlu0 0
    %869 = vperm.xlu0 %868, %v679
    %v870 = vpop.permute.xlu0 %869
    %873 = vset.pattern.permute.xlu0 0
    %874 = vperm.xlu0 %873, %v680
    %v875 = vpop.permute.xlu0 %874
    %878 = vset.pattern.permute.xlu0 0
    %879 = vperm.xlu0 %878, %v681
    %v880 = vpop.permute.xlu0 %879
    %883 = vset.pattern.permute.xlu0 0
    %884 = vperm.xlu0 %883, %v682
    %v885 = vpop.permute.xlu0 %884
    %888 = vset.pattern.permute.xlu0 0
    %889 = vperm.xlu0 %888, %v683
    %v890 = vpop.permute.xlu0 %889
    %893 = vset.pattern.permute.xlu0 0
    %894 = vperm.xlu0 %893, %v684
    %v895 = vpop.permute.xlu0 %894
    %898 = vset.pattern.permute.xlu0 0
    %899 = vperm.xlu0 %898, %v685
    %v900 = vpop.permute.xlu0 %899
    %903 = vset.pattern.permute.xlu0 0
    %904 = vperm.xlu0 %903, %v686
    %v905 = vpop.permute.xlu0 %904
    %908 = vset.pattern.permute.xlu0 0
    %909 = vperm.xlu0 %908, %v687
    %v910 = vpop.permute.xlu0 %909
    %913 = vset.pattern.permute.xlu0 0
    %914 = vperm.xlu0 %913, %v688
    %v915 = vpop.permute.xlu0 %914
    %918 = vset.pattern.permute.xlu0 0
    %919 = vperm.xlu0 %918, %v689
    %v920 = vpop.permute.xlu0 %919
    %923 = vset.pattern.permute.xlu0 0
    %924 = vperm.xlu0 %923, %v690
    %v925 = vpop.permute.xlu0 %924
    %928 = vset.pattern.permute.xlu0 0
    %929 = vperm.xlu0 %928, %v691
    %v930 = vpop.permute.xlu0 %929
    %933 = vset.pattern.permute.xlu0 0
    %934 = vperm.xlu0 %933, %v692
    %v935 = vpop.permute.xlu0 %934
    %938 = vset.pattern.permute.xlu0 0
    %939 = vperm.xlu0 %938, %v693
    %v940 = vpop.permute.xlu0 %939
    %943 = vset.pattern.permute.xlu0 0
    %944 = vperm.xlu0 %943, %v694
    %v945 = vpop.permute.xlu0 %944
    %948 = vset.pattern.permute.xlu0 0
    %949 = vperm.xlu0 %948, %v695
    %v950 = vpop.permute.xlu0 %949
    %953 = vset.pattern.permute.xlu0 0
    %954 = vperm.xlu0 %953, %v696
    %v955 = vpop.permute.xlu0 %954
    %958 = vset.pattern.permute.xlu0 0
    %959 = vperm.xlu0 %958, %v697
    %v960 = vpop.permute.xlu0 %959
    %963 = vset.pattern.permute.xlu0 0
    %964 = vperm.xlu0 %963, %v698
    %v965 = vpop.permute.xlu0 %964
    %968 = vset.pattern.permute.xlu0 0
    %969 = vperm.xlu0 %968, %v699
    %v970 = vpop.permute.xlu0 %969
    %973 = vset.pattern.permute.xlu0 0
    %974 = vperm.xlu0 %973, %v700
    %v975 = vpop.permute.xlu0 %974
    %978 = vset.pattern.permute.xlu0 0
    %979 = vperm.xlu0 %978, %v701
    %v980 = vpop.permute.xlu0 %979
    %983 = vset.pattern.permute.xlu0 0
    %984 = vperm.xlu0 %983, %v702
    %v985 = vpop.permute.xlu0 %984
    %988 = vset.pattern.permute.xlu0 0
    %989 = vperm.xlu0 %988, %v703
    %v990 = vpop.permute.xlu0 %989
    %993 = vset.pattern.permute.xlu0 0
    %994 = vperm.xlu0 %993, %v704
    %v995 = vpop.permute.xlu0 %994
    %998 = vset.pattern.permute.xlu0 0
    %999 = vperm.xlu0 %998, %v705
    %v1000 = vpop.permute.xlu0 %999
    %1003 = vset.pattern.permute.xlu0 0
    %1004 = vperm.xlu0 %1003, %v706
    %v1005 = vpop.permute.xlu0 %1004
    %1008 = vset.pattern.permute.xlu0 0
    %1009 = vperm.xlu0 %1008, %v707
    %v1010 = vpop.permute.xlu0 %1009
    %1013 = vset.pattern.permute.xlu0 0
    %1014 = vperm.xlu0 %1013, %v708
    %v1015 = vpop.permute.xlu0 %1014
    %1018 = vset.pattern.permute.xlu0 0
    %1019 = vperm.xlu0 %1018, %v709
    %v1020 = vpop.permute.xlu0 %1019
    %1023 = vset.pattern.permute.xlu0 0
    %1024 = vperm.xlu0 %1023, %v710
    %v1025 = vpop.permute.xlu0 %1024
    %1028 = vset.pattern.permute.xlu0 0
    %1029 = vperm.xlu0 %1028, %v711
    %v1030 = vpop.permute.xlu0 %1029
    %v1096 = vunpack.c.l.b16 %v576
    %v1097 = vunpack.c.l.b16 %v577
    %v1098 = vunpack.c.l.b16 %v578
    %v1099 = vunpack.c.l.b16 %v579
    %v1100 = vunpack.c.l.b16 %v580
    %v1101 = vunpack.c.l.b16 %v581
    %v1102 = vunpack.c.l.b16 %v582
    %v1103 = vunpack.c.l.b16 %v583
    %v1104 = vunpack.c.l.b16 %v584
    %v1105 = vunpack.c.l.b16 %v585
    %v1106 = vunpack.c.l.b16 %v586
    %v1107 = vunpack.c.l.b16 %v587
    %v1108 = vunpack.c.l.b16 %v588
    %v1109 = vunpack.c.l.b16 %v589
    %v1110 = vunpack.c.l.b16 %v590
    %v1111 = vunpack.c.l.b16 %v591
    %v1112 = vunpack.c.l.b16 %v592
    %v1113 = vunpack.c.l.b16 %v593
    %v1114 = vunpack.c.l.b16 %v594
    %v1115 = vunpack.c.l.b16 %v595
    %v1116 = vunpack.c.l.b16 %v596
    %v1117 = vunpack.c.l.b16 %v597
    %v1118 = vunpack.c.l.b16 %v598
    %v1119 = vunpack.c.l.b16 %v599
    %v1120 = vunpack.c.l.b16 %v600
    %v1121 = vunpack.c.l.b16 %v601
    %v1122 = vunpack.c.l.b16 %v602
    %v1123 = vunpack.c.l.b16 %v603
    %v1124 = vunpack.c.l.b16 %v604
    %v1125 = vunpack.c.l.b16 %v605
    %v1126 = vunpack.c.l.b16 %v606
    %v1127 = vunpack.c.l.b16 %v607
    %v1128 = vunpack.c.l.b16 %v608
    %v1129 = vunpack.c.l.b16 %v609
    %v1130 = vunpack.c.l.b16 %v610
    %v1131 = vunpack.c.l.b16 %v611
    %v1132 = vunpack.c.l.b16 %v612
    %v1133 = vunpack.c.l.b16 %v613
    %v1134 = vunpack.c.l.b16 %v614
    %v1135 = vunpack.c.l.b16 %v615
    %v1136 = vunpack.c.l.b16 %v616
    %v1137 = vunpack.c.l.b16 %v617
    %v1138 = vunpack.c.l.b16 %v618
    %v1139 = vunpack.c.l.b16 %v619
    %v1140 = vunpack.c.l.b16 %v620
    %v1141 = vunpack.c.l.b16 %v621
    %v1142 = vunpack.c.l.b16 %v622
    %v1143 = vunpack.c.l.b16 %v623
    %v1144 = vunpack.c.l.b16 %v624
    %v1145 = vunpack.c.l.b16 %v625
    %v1146 = vunpack.c.l.b16 %v626
    %v1147 = vunpack.c.l.b16 %v627
    %v1148 = vunpack.c.l.b16 %v628
    %v1149 = vunpack.c.l.b16 %v629
    %v1150 = vunpack.c.l.b16 %v630
    %v1151 = vunpack.c.l.b16 %v631
    %v1152 = vunpack.c.l.b16 %v632
    %v1153 = vunpack.c.l.b16 %v633
    %v1154 = vunpack.c.l.b16 %v634
    %v1155 = vunpack.c.l.b16 %v635
    %v1156 = vunpack.c.l.b16 %v636
    %v1157 = vunpack.c.l.b16 %v637
    %v1158 = vunpack.c.l.b16 %v638
    %v1159 = vunpack.c.l.b16 %v639
    %v1160 = vpack.c.b16 %v1097, %v1096
    %v1161 = vpack.c.b16 %v1099, %v1098
    %v1162 = vpack.c.b16 %v1101, %v1100
    %v1163 = vpack.c.b16 %v1103, %v1102
    %v1164 = vpack.c.b16 %v1105, %v1104
    %v1165 = vpack.c.b16 %v1107, %v1106
    %v1166 = vpack.c.b16 %v1109, %v1108
    %v1167 = vpack.c.b16 %v1111, %v1110
    %v1168 = vpack.c.b16 %v1113, %v1112
    %v1169 = vpack.c.b16 %v1115, %v1114
    %v1170 = vpack.c.b16 %v1117, %v1116
    %v1171 = vpack.c.b16 %v1119, %v1118
    %v1172 = vpack.c.b16 %v1121, %v1120
    %v1173 = vpack.c.b16 %v1123, %v1122
    %v1174 = vpack.c.b16 %v1125, %v1124
    %v1175 = vpack.c.b16 %v1127, %v1126
    %v1176 = vpack.c.b16 %v1129, %v1128
    %v1177 = vpack.c.b16 %v1131, %v1130
    %v1178 = vpack.c.b16 %v1133, %v1132
    %v1179 = vpack.c.b16 %v1135, %v1134
    %v1180 = vpack.c.b16 %v1137, %v1136
    %v1181 = vpack.c.b16 %v1139, %v1138
    %v1182 = vpack.c.b16 %v1141, %v1140
    %v1183 = vpack.c.b16 %v1143, %v1142
    %v1184 = vpack.c.b16 %v1145, %v1144
    %v1185 = vpack.c.b16 %v1147, %v1146
    %v1186 = vpack.c.b16 %v1149, %v1148
    %v1187 = vpack.c.b16 %v1151, %v1150
    %v1188 = vpack.c.b16 %v1153, %v1152
    %v1189 = vpack.c.b16 %v1155, %v1154
    %v1190 = vpack.c.b16 %v1157, %v1156
    %v1191 = vpack.c.b16 %v1159, %v1158
    %1224 = vmatprep.subr.bf16.mxu0 0
    %1225 = vmatpush1.bf16.msra.mxu0 %v640
    %1226 = vmatprep.subr.bf16.mxu0 0
    %1227 = vmatpush1.bf16.msra.mxu0 %v641
    %1228 = vmatprep.subr.bf16.mxu0 0
    %1229 = vmatpush1.bf16.msra.mxu0 %v642
    %1230 = vmatprep.subr.bf16.mxu0 0
    %1231 = vmatpush1.bf16.msra.mxu0 %v643
    %1232 = vmatprep.subr.bf16.mxu0 0
    %1233 = vmatpush1.bf16.msra.mxu0 %v644
    %1234 = vmatprep.subr.bf16.mxu0 0
    %1235 = vmatpush1.bf16.msra.mxu0 %v645
    %1236 = vmatprep.subr.bf16.mxu0 0
    %1237 = vmatpush1.bf16.msra.mxu0 %v646
    %1238 = vmatprep.subr.bf16.mxu0 0
    %1239 = vmatpush1.bf16.msra.mxu0 %v647
    %1240 = vmatprep.subr.bf16.mxu0 0
    %1241 = vmatpush1.bf16.msra.mxu0 0
    %1242 = vmatprep.subr.bf16.mxu0 0
    %1243 = vmatpush1.bf16.msra.mxu0 0
    %1244 = vmatprep.subr.bf16.mxu0 0
    %1245 = vmatpush1.bf16.msra.mxu0 0
    %1246 = vmatprep.subr.bf16.mxu0 0
    %1247 = vmatpush1.bf16.msra.mxu0 0
    %1248 = vmatprep.subr.bf16.mxu0 0
    %1249 = vmatpush1.bf16.msra.mxu0 0
    %1250 = vmatprep.subr.bf16.mxu0 0
    %1251 = vmatpush1.bf16.msra.mxu0 0
    %1252 = vmatprep.subr.bf16.mxu0 0
    %1253 = vmatpush1.bf16.msra.mxu0 0
    %1254 = vmatprep.subr.bf16.mxu0 0
    %1255 = vmatpush1.bf16.msra.mxu0 0
    %1256 = vmatprep.mubr.bf16.mxu0 0
    %1257 = vmatmul.mubr.bf16.gmra.mrb[0].mxu0 %v1160
    %v1258 = vpop.f32.mrb[0].mxu0
    %v1259 = vadd.f32 %v715, %v1258
    %v1260 = vpop.f32.mrb[0].mxu0
    %v1261 = vpop.f32.mrb[0].mxu0
    %v1262 = vadd.f32 %v720, %v1261
    %v1263 = vpop.f32.mrb[0].mxu0
    %1264 = vmatprep.mubr.bf16.mxu0 0
    %1265 = vmatmul.mubr.bf16.gmra.mrb[0].mxu0 %v1161
    %v1266 = vpop.f32.mrb[0].mxu0
    %v1267 = vadd.f32 %v725, %v1266
    %v1268 = vpop.f32.mrb[0].mxu0
    %v1269 = vpop.f32.mrb[0].mxu0
    %v1270 = vadd.f32 %v730, %v1269
    %v1271 = vpop.f32.mrb[0].mxu0
    %1272 = vmatprep.mubr.bf16.mxu0 0
    %1273 = vmatmul.mubr.bf16.gmra.mrb[0].mxu0 %v1162
    %v1274 = vpop.f32.mrb[0].mxu0
    %v1275 = vadd.f32 %v735, %v1274
    %v1276 = vpop.f32.mrb[0].mxu0
    %v1277 = vpop.f32.mrb[0].mxu0
    %v1278 = vadd.f32 %v740, %v1277
    %v1279 = vpop.f32.mrb[0].mxu0
    %1280 = vmatprep.mubr.bf16.mxu0 0
    %1281 = vmatmul.mubr.bf16.gmra.mrb[0].mxu0 %v1163
    %v1282 = vpop.f32.mrb[0].mxu0
    %v1283 = vadd.f32 %v745, %v1282
    %v1284 = vpop.f32.mrb[0].mxu0
    %v1285 = vpop.f32.mrb[0].mxu0
    %v1286 = vadd.f32 %v750, %v1285
    %v1287 = vpop.f32.mrb[0].mxu0
    %1288 = vmatprep.mubr.bf16.mxu0 0
    %1289 = vmatmul.mubr.bf16.gmra.mrb[0].mxu0 %v1164
    %v1290 = vpop.f32.mrb[0].mxu0
    %v1291 = vadd.f32 %v755, %v1290
    %v1292 = vpop.f32.mrb[0].mxu0
    %v1293 = vpop.f32.mrb[0].mxu0
    %v1294 = vadd.f32 %v760, %v1293
    %v1295 = vpop.f32.mrb[0].mxu0
    %1296 = vmatprep.mubr.bf16.mxu0 0
    %1297 = vmatmul.mubr.bf16.gmra.mrb[0].mxu0 %v1165
    %v1298 = vpop.f32.mrb[0].mxu0
    %v1299 = vadd.f32 %v765, %v1298
    %v1300 = vpop.f32.mrb[0].mxu0
    %v1301 = vpop.f32.mrb[0].mxu0
    %v1302 = vadd.f32 %v770, %v1301
    %v1303 = vpop.f32.mrb[0].mxu0
    %1304 = vmatprep.mubr.bf16.mxu0 0
    %1305 = vmatmul.mubr.bf16.gmra.mrb[0].mxu0 %v1166
    %v1306 = vpop.f32.mrb[0].mxu0
    %v1307 = vadd.f32 %v775, %v1306
    %v1308 = vpop.f32.mrb[0].mxu0
    %v1309 = vpop.f32.mrb[0].mxu0
    %v1310 = vadd.f32 %v780, %v1309
    %v1311 = vpop.f32.mrb[0].mxu0
    %1312 = vmatprep.mubr.bf16.mxu0 0
    %1313 = vmatmul.mubr.bf16.gmra.mrb[0].mxu0 %v1167
    %v1314 = vpop.f32.mrb[0].mxu0
    %v1315 = vadd.f32 %v785, %v1314
    %v1316 = vpop.f32.mrb[0].mxu0
    %v1317 = vpop.f32.mrb[0].mxu0
    %v1318 = vadd.f32 %v790, %v1317
    %v1319 = vpop.f32.mrb[0].mxu0
    %1320 = vmatprep.mubr.bf16.mxu0 0
    %1321 = vmatmul.mubr.bf16.gmra.mrb[0].mxu0 %v1168
    %v1322 = vpop.f32.mrb[0].mxu0
    %v1323 = vadd.f32 %v795, %v1322
    %v1324 = vpop.f32.mrb[0].mxu0
    %v1325 = vpop.f32.mrb[0].mxu0
    %v1326 = vadd.f32 %v800, %v1325
    %v1327 = vpop.f32.mrb[0].mxu0
    %1328 = vmatprep.mubr.bf16.mxu0 0
    %1329 = vmatmul.mubr.bf16.gmra.mrb[0].mxu0 %v1169
    %v1330 = vpop.f32.mrb[0].mxu0
    %v1331 = vadd.f32 %v805, %v1330
    %v1332 = vpop.f32.mrb[0].mxu0
    %v1333 = vpop.f32.mrb[0].mxu0
    %v1334 = vadd.f32 %v810, %v1333
    %v1335 = vpop.f32.mrb[0].mxu0
    %1336 = vmatprep.mubr.bf16.mxu0 0
    %1337 = vmatmul.mubr.bf16.gmra.mrb[0].mxu0 %v1170
    %v1338 = vpop.f32.mrb[0].mxu0
    %v1339 = vadd.f32 %v815, %v1338
    %v1340 = vpop.f32.mrb[0].mxu0
    %v1341 = vpop.f32.mrb[0].mxu0
    %v1342 = vadd.f32 %v820, %v1341
    %v1343 = vpop.f32.mrb[0].mxu0
    %1344 = vmatprep.mubr.bf16.mxu0 0
    %1345 = vmatmul.mubr.bf16.gmra.mrb[0].mxu0 %v1171
    %v1346 = vpop.f32.mrb[0].mxu0
    %v1347 = vadd.f32 %v825, %v1346
    %v1348 = vpop.f32.mrb[0].mxu0
    %v1349 = vpop.f32.mrb[0].mxu0
    %v1350 = vadd.f32 %v830, %v1349
    %v1351 = vpop.f32.mrb[0].mxu0
    %1352 = vmatprep.mubr.bf16.mxu0 0
    %1353 = vmatmul.mubr.bf16.gmra.mrb[0].mxu0 %v1172
    %v1354 = vpop.f32.mrb[0].mxu0
    %v1355 = vadd.f32 %v835, %v1354
    %v1356 = vpop.f32.mrb[0].mxu0
    %v1357 = vpop.f32.mrb[0].mxu0
    %v1358 = vadd.f32 %v840, %v1357
    %v1359 = vpop.f32.mrb[0].mxu0
    %1360 = vmatprep.mubr.bf16.mxu0 0
    %1361 = vmatmul.mubr.bf16.gmra.mrb[0].mxu0 %v1173
    %v1362 = vpop.f32.mrb[0].mxu0
    %v1363 = vadd.f32 %v845, %v1362
    %v1364 = vpop.f32.mrb[0].mxu0
    %v1365 = vpop.f32.mrb[0].mxu0
    %v1366 = vadd.f32 %v850, %v1365
    %v1367 = vpop.f32.mrb[0].mxu0
    %1368 = vmatprep.mubr.bf16.mxu0 0
    %1369 = vmatmul.mubr.bf16.gmra.mrb[0].mxu0 %v1174
    %v1370 = vpop.f32.mrb[0].mxu0
    %v1371 = vadd.f32 %v855, %v1370
    %v1372 = vpop.f32.mrb[0].mxu0
    %v1373 = vpop.f32.mrb[0].mxu0
    %v1374 = vadd.f32 %v860, %v1373
    %v1375 = vpop.f32.mrb[0].mxu0
    %1376 = vmatprep.mubr.bf16.mxu0 0
    %1377 = vmatmul.mubr.bf16.gmra.mrb[0].mxu0 %v1175
    %v1378 = vpop.f32.mrb[0].mxu0
    %v1379 = vadd.f32 %v865, %v1378
    %v1380 = vpop.f32.mrb[0].mxu0
    %v1381 = vpop.f32.mrb[0].mxu0
    %v1382 = vadd.f32 %v870, %v1381
    %v1383 = vpop.f32.mrb[0].mxu0
    %1384 = vmatprep.mubr.bf16.mxu0 0
    %1385 = vmatmul.mubr.bf16.gmra.mrb[0].mxu0 %v1176
    %v1386 = vpop.f32.mrb[0].mxu0
    %v1387 = vadd.f32 %v875, %v1386
    %v1388 = vpop.f32.mrb[0].mxu0
    %v1389 = vpop.f32.mrb[0].mxu0
    %v1390 = vadd.f32 %v880, %v1389
    %v1391 = vpop.f32.mrb[0].mxu0
    %1392 = vmatprep.mubr.bf16.mxu0 0
    %1393 = vmatmul.mubr.bf16.gmra.mrb[0].mxu0 %v1177
    %v1394 = vpop.f32.mrb[0].mxu0
    %v1395 = vadd.f32 %v885, %v1394
    %v1396 = vpop.f32.mrb[0].mxu0
    %v1397 = vpop.f32.mrb[0].mxu0
    %v1398 = vadd.f32 %v890, %v1397
    %v1399 = vpop.f32.mrb[0].mxu0
    %1400 = vmatprep.mubr.bf16.mxu0 0
    %1401 = vmatmul.mubr.bf16.gmra.mrb[0].mxu0 %v1178
    %v1402 = vpop.f32.mrb[0].mxu0
    %v1403 = vadd.f32 %v895, %v1402
    %v1404 = vpop.f32.mrb[0].mxu0
    %v1405 = vpop.f32.mrb[0].mxu0
    %v1406 = vadd.f32 %v900, %v1405
    %v1407 = vpop.f32.mrb[0].mxu0
    %1408 = vmatprep.mubr.bf16.mxu0 0
    %1409 = vmatmul.mubr.bf16.gmra.mrb[0].mxu0 %v1179
    %v1410 = vpop.f32.mrb[0].mxu0
    %v1411 = vadd.f32 %v905, %v1410
    %v1412 = vpop.f32.mrb[0].mxu0
    %v1413 = vpop.f32.mrb[0].mxu0
    %v1414 = vadd.f32 %v910, %v1413
    %v1415 = vpop.f32.mrb[0].mxu0
    %1416 = vmatprep.mubr.bf16.mxu0 0
    %1417 = vmatmul.mubr.bf16.gmra.mrb[0].mxu0 %v1180
    %v1418 = vpop.f32.mrb[0].mxu0
    %v1419 = vadd.f32 %v915, %v1418
    %v1420 = vpop.f32.mrb[0].mxu0
    %v1421 = vpop.f32.mrb[0].mxu0
    %v1422 = vadd.f32 %v920, %v1421
    %v1423 = vpop.f32.mrb[0].mxu0
    %1424 = vmatprep.mubr.bf16.mxu0 0
    %1425 = vmatmul.mubr.bf16.gmra.mrb[0].mxu0 %v1181
    %v1426 = vpop.f32.mrb[0].mxu0
    %v1427 = vadd.f32 %v925, %v1426
    %v1428 = vpop.f32.mrb[0].mxu0
    %v1429 = vpop.f32.mrb[0].mxu0
    %v1430 = vadd.f32 %v930, %v1429
    %v1431 = vpop.f32.mrb[0].mxu0
    %1432 = vmatprep.mubr.bf16.mxu0 0
    %1433 = vmatmul.mubr.bf16.gmra.mrb[0].mxu0 %v1182
    %v1434 = vpop.f32.mrb[0].mxu0
    %v1435 = vadd.f32 %v935, %v1434
    %v1436 = vpop.f32.mrb[0].mxu0
    %v1437 = vpop.f32.mrb[0].mxu0
    %v1438 = vadd.f32 %v940, %v1437
    %v1439 = vpop.f32.mrb[0].mxu0
    %1440 = vmatprep.mubr.bf16.mxu0 0
    %1441 = vmatmul.mubr.bf16.gmra.mrb[0].mxu0 %v1183
    %v1442 = vpop.f32.mrb[0].mxu0
    %v1443 = vadd.f32 %v945, %v1442
    %v1444 = vpop.f32.mrb[0].mxu0
    %v1445 = vpop.f32.mrb[0].mxu0
    %v1446 = vadd.f32 %v950, %v1445
    %v1447 = vpop.f32.mrb[0].mxu0
    %1448 = vmatprep.mubr.bf16.mxu0 0
    %1449 = vmatmul.mubr.bf16.gmra.mrb[0].mxu0 %v1184
    %v1450 = vpop.f32.mrb[0].mxu0
    %v1451 = vadd.f32 %v955, %v1450
    %v1452 = vpop.f32.mrb[0].mxu0
    %v1453 = vpop.f32.mrb[0].mxu0
    %v1454 = vadd.f32 %v960, %v1453
    %v1455 = vpop.f32.mrb[0].mxu0
    %1456 = vmatprep.mubr.bf16.mxu0 0
    %1457 = vmatmul.mubr.bf16.gmra.mrb[0].mxu0 %v1185
    %v1458 = vpop.f32.mrb[0].mxu0
    %v1459 = vadd.f32 %v965, %v1458
    %v1460 = vpop.f32.mrb[0].mxu0
    %v1461 = vpop.f32.mrb[0].mxu0
    %v1462 = vadd.f32 %v970, %v1461
    %v1463 = vpop.f32.mrb[0].mxu0
    %1464 = vmatprep.mubr.bf16.mxu0 0
    %1465 = vmatmul.mubr.bf16.gmra.mrb[0].mxu0 %v1186
    %v1466 = vpop.f32.mrb[0].mxu0
    %v1467 = vadd.f32 %v975, %v1466
    %v1468 = vpop.f32.mrb[0].mxu0
    %v1469 = vpop.f32.mrb[0].mxu0
    %v1470 = vadd.f32 %v980, %v1469
    %v1471 = vpop.f32.mrb[0].mxu0
    %1472 = vmatprep.mubr.bf16.mxu0 0
    %1473 = vmatmul.mubr.bf16.gmra.mrb[0].mxu0 %v1187
    %v1474 = vpop.f32.mrb[0].mxu0
    %v1475 = vadd.f32 %v985, %v1474
    %v1476 = vpop.f32.mrb[0].mxu0
    %v1477 = vpop.f32.mrb[0].mxu0
    %v1478 = vadd.f32 %v990, %v1477
    %v1479 = vpop.f32.mrb[0].mxu0
    %1480 = vmatprep.mubr.bf16.mxu0 0
    %1481 = vmatmul.mubr.bf16.gmra.mrb[0].mxu0 %v1188
    %v1482 = vpop.f32.mrb[0].mxu0
    %v1483 = vadd.f32 %v995, %v1482
    %v1484 = vpop.f32.mrb[0].mxu0
    %v1485 = vpop.f32.mrb[0].mxu0
    %v1486 = vadd.f32 %v1000, %v1485
    %v1487 = vpop.f32.mrb[0].mxu0
    %1488 = vmatprep.mubr.bf16.mxu0 0
    %1489 = vmatmul.mubr.bf16.gmra.mrb[0].mxu0 %v1189
    %v1490 = vpop.f32.mrb[0].mxu0
    %v1491 = vadd.f32 %v1005, %v1490
    %v1492 = vpop.f32.mrb[0].mxu0
    %v1493 = vpop.f32.mrb[0].mxu0
    %v1494 = vadd.f32 %v1010, %v1493
    %v1495 = vpop.f32.mrb[0].mxu0
    %1496 = vmatprep.mubr.bf16.mxu0 0
    %1497 = vmatmul.mubr.bf16.gmra.mrb[0].mxu0 %v1190
    %v1498 = vpop.f32.mrb[0].mxu0
    %v1499 = vadd.f32 %v1015, %v1498
    %v1500 = vpop.f32.mrb[0].mxu0
    %v1501 = vpop.f32.mrb[0].mxu0
    %v1502 = vadd.f32 %v1020, %v1501
    %v1503 = vpop.f32.mrb[0].mxu0
    %1504 = vmatprep.mubr.bf16.mxu0 0
    %1505 = vmatmul.mubr.bf16.gmra.mrb[0].mxu0 %v1191
    %v1506 = vpop.f32.mrb[0].mxu0
    %v1507 = vadd.f32 %v1025, %v1506
    %v1508 = vpop.f32.mrb[0].mxu0
    %v1509 = vpop.f32.mrb[0].mxu0
    %v1510 = vadd.f32 %v1030, %v1509
    %v1511 = vpop.f32.mrb[0].mxu0
    %1512 = vdwg.mxu0
    %v1513 = vmax.f32 %v1259, 0.0
    %v1514 = vmax.f32 %v1262, 0.0
    %v1515 = vmax.f32 %v1267, 0.0
    %v1516 = vmax.f32 %v1270, 0.0
    %v1517 = vmax.f32 %v1275, 0.0
    %v1518 = vmax.f32 %v1278, 0.0
    %v1519 = vmax.f32 %v1283, 0.0
    %v1520 = vmax.f32 %v1286, 0.0
    %v1521 = vmax.f32 %v1291, 0.0
    %v1522 = vmax.f32 %v1294, 0.0
    %v1523 = vmax.f32 %v1299, 0.0
    %v1524 = vmax.f32 %v1302, 0.0
    %v1525 = vmax.f32 %v1307, 0.0
    %v1526 = vmax.f32 %v1310, 0.0
    %v1527 = vmax.f32 %v1315, 0.0
    %v1528 = vmax.f32 %v1318, 0.0
    %v1529 = vmax.f32 %v1323, 0.0
    %v1530 = vmax.f32 %v1326, 0.0
    %v1531 = vmax.f32 %v1331, 0.0
    %v1532 = vmax.f32 %v1334, 0.0
    %v1533 = vmax.f32 %v1339, 0.0
    %v1534 = vmax.f32 %v1342, 0.0
    %v1535 = vmax.f32 %v1347, 0.0
    %v1536 = vmax.f32 %v1350, 0.0
    %v1537 = vmax.f32 %v1355, 0.0
    %v1538 = vmax.f32 %v1358, 0.0
    %v1539 = vmax.f32 %v1363, 0.0
    %v1540 = vmax.f32 %v1366, 0.0
    %v1541 = vmax.f32 %v1371, 0.0
    %v1542 = vmax.f32 %v1374, 0.0
    %v1543 = vmax.f32 %v1379, 0.0
    %v1544 = vmax.f32 %v1382, 0.0
    %v1545 = vmax.f32 %v1387, 0.0
    %v1546 = vmax.f32 %v1390, 0.0
    %v1547 = vmax.f32 %v1395, 0.0
    %v1548 = vmax.f32 %v1398, 0.0
    %v1549 = vmax.f32 %v1403, 0.0
    %v1550 = vmax.f32 %v1406, 0.0
    %v1551 = vmax.f32 %v1411, 0.0
    %v1552 = vmax.f32 %v1414, 0.0
    %v1553 = vmax.f32 %v1419, 0.0
    %v1554 = vmax.f32 %v1422, 0.0
    %v1555 = vmax.f32 %v1427, 0.0
    %v1556 = vmax.f32 %v1430, 0.0
    %v1557 = vmax.f32 %v1435, 0.0
    %v1558 = vmax.f32 %v1438, 0.0
    %v1559 = vmax.f32 %v1443, 0.0
    %v1560 = vmax.f32 %v1446, 0.0
    %v1561 = vmax.f32 %v1451, 0.0
    %v1562 = vmax.f32 %v1454, 0.0
    %v1563 = vmax.f32 %v1459, 0.0
    %v1564 = vmax.f32 %v1462, 0.0
    %v1565 = vmax.f32 %v1467, 0.0
    %v1566 = vmax.f32 %v1470, 0.0
    %v1567 = vmax.f32 %v1475, 0.0
    %v1568 = vmax.f32 %v1478, 0.0
    %v1569 = vmax.f32 %v1483, 0.0
    %v1570 = vmax.f32 %v1486, 0.0
    %v1571 = vmax.f32 %v1491, 0.0
    %v1572 = vmax.f32 %v1494, 0.0
    %v1573 = vmax.f32 %v1499, 0.0
    %v1574 = vmax.f32 %v1502, 0.0
    %v1575 = vmax.f32 %v1507, 0.0
    %v1576 = vmax.f32 %v1510, 0.0
    %v1577 = vld [vmem:[%s5] sm:$0xff]
    %v1578 = vld [vmem:[%s5 + $0x8] sm:$0xff]
    %v1579 = vpack.c.bf16 %v1514, %v1513
    %v1580 = vpack.c.bf16 %v1516, %v1515
    %v1581 = vpack.c.bf16 %v1518, %v1517
    %v1582 = vpack.c.bf16 %v1520, %v1519
    %v1583 = vpack.c.bf16 %v1522, %v1521
    %v1584 = vpack.c.bf16 %v1524, %v1523
    %v1585 = vpack.c.bf16 %v1526, %v1525
    %v1586 = vpack.c.bf16 %v1528, %v1527
    %v1587 = vpack.c.bf16 %v1530, %v1529
    %v1588 = vpack.c.bf16 %v1532, %v1531
    %v1589 = vpack.c.bf16 %v1534, %v1533
    %v1590 = vpack.c.bf16 %v1536, %v1535
    %v1591 = vpack.c.bf16 %v1538, %v1537
    %v1592 = vpack.c.bf16 %v1540, %v1539
    %v1593 = vpack.c.bf16 %v1542, %v1541
    %v1594 = vpack.c.bf16 %v1544, %v1543
    %v1595 = vpack.c.bf16 %v1546, %v1545
    %v1596 = vpack.c.bf16 %v1548, %v1547
    %v1597 = vpack.c.bf16 %v1550, %v1549
    %v1598 = vpack.c.bf16 %v1552, %v1551
    %v1599 = vpack.c.bf16 %v1554, %v1553
    %v1600 = vpack.c.bf16 %v1556, %v1555
    %v1601 = vpack.c.bf16 %v1558, %v1557
    %v1602 = vpack.c.bf16 %v1560, %v1559
    %v1603 = vpack.c.bf16 %v1562, %v1561
    %v1604 = vpack.c.bf16 %v1564, %v1563
    %v1605 = vpack.c.bf16 %v1566, %v1565
    %v1606 = vpack.c.bf16 %v1568, %v1567
    %v1607 = vpack.c.bf16 %v1570, %v1569
    %v1608 = vpack.c.bf16 %v1572, %v1571
    %v1609 = vpack.c.bf16 %v1574, %v1573
    %v1610 = vpack.c.bf16 %v1576, %v1575
    %v1611 = vld [vmem:[%s6] sm:$0xff]
    %1613 = vset.pattern.permute.xlu0 0
    %1614 = vperm.xlu0 %1613, %v1611
    %v1615 = vpop.permute.xlu0 %1614
    %v1619 = vunpack.c.l.b16 %v1577
    %v1620 = vunpack.c.h.b16 %v1577
    %v1621 = vunpack.c.l.b16 %v1578
    %v1622 = vunpack.c.h.b16 %v1578
    %v1623 = vpack.c.b16 %v1619, %v1619
    %v1624 = vpack.c.b16 %v1620, %v1620
    %v1625 = vpack.c.b16 %v1621, %v1621
    %v1626 = vpack.c.b16 %v1622, %v1622
    %1631 = vmatprep.subr.bf16.mxu0 0
    %1632 = vmatpush1.bf16.msra.mxu0 %v1579
    %1633 = vmatprep.subr.bf16.mxu0 0
    %1634 = vmatpush1.bf16.msra.mxu0 %v1580
    %1635 = vmatprep.subr.bf16.mxu0 0
    %1636 = vmatpush1.bf16.msra.mxu0 %v1581
    %1637 = vmatprep.subr.bf16.mxu0 0
    %1638 = vmatpush1.bf16.msra.mxu0 %v1582
    %1639 = vmatprep.subr.bf16.mxu0 0
    %1640 = vmatpush1.bf16.msra.mxu0 %v1583
    %1641 = vmatprep.subr.bf16.mxu0 0
    %1642 = vmatpush1.bf16.msra.mxu0 %v1584
    %1643 = vmatprep.subr.bf16.mxu0 0
    %1644 = vmatpush1.bf16.msra.mxu0 %v1585
    %1645 = vmatprep.subr.bf16.mxu0 0
    %1646 = vmatpush1.bf16.msra.mxu0 %v1586
    %1647 = vmatprep.subr.bf16.mxu0 0
    %1648 = vmatpush1.bf16.msra.mxu0 %v1587
    %1649 = vmatprep.subr.bf16.mxu0 0
    %1650 = vmatpush1.bf16.msra.mxu0 %v1588
    %1651 = vmatprep.subr.bf16.mxu0 0
    %1652 = vmatpush1.bf16.msra.mxu0 %v1589
    %1653 = vmatprep.subr.bf16.mxu0 0
    %1654 = vmatpush1.bf16.msra.mxu0 %v1590
    %1655 = vmatprep.subr.bf16.mxu0 0
    %1656 = vmatpush1.bf16.msra.mxu0 %v1591
    %1657 = vmatprep.subr.bf16.mxu0 0
    %1658 = vmatpush1.bf16.msra.mxu0 %v1592
    %1659 = vmatprep.subr.bf16.mxu0 0
    %1660 = vmatpush1.bf16.msra.mxu0 %v1593
    %1661 = vmatprep.subr.bf16.mxu0 0
    %1662 = vmatpush1.bf16.msra.mxu0 %v1594
    %1663 = vmatprep.mubr.bf16.mxu0 %v1624
    %1664 = vmatmul.mubr.bf16.gmra.mrb[0].mxu0 %v1623
    %v1665 = vpop.f32.mrb[0].mxu0
    %v1666 = vadd.f32 %v1615, %v1665
    %v1667 = vpop.f32.mrb[0].mxu0
    %v1668 = vpop.f32.mrb[0].mxu0
    %v1669 = vpop.f32.mrb[0].mxu0
    %1670 = vdwg.mxu0
    %1671 = vmatprep.subr.bf16.mxu0 0
    %1672 = vmatpush1.bf16.msra.mxu0 %v1595
    %1673 = vmatprep.subr.bf16.mxu0 0
    %1674 = vmatpush1.bf16.msra.mxu0 %v1596
    %1675 = vmatprep.subr.bf16.mxu0 0
    %1676 = vmatpush1.bf16.msra.mxu0 %v1597
    %1677 = vmatprep.subr.bf16.mxu0 0
    %1678 = vmatpush1.bf16.msra.mxu0 %v1598
    %1679 = vmatprep.subr.bf16.mxu0 0
    %1680 = vmatpush1.bf16.msra.mxu0 %v1599
    %1681 = vmatprep.subr.bf16.mxu0 0
    %1682 = vmatpush1.bf16.msra.mxu0 %v1600
    %1683 = vmatprep.subr.bf16.mxu0 0
    %1684 = vmatpush1.bf16.msra.mxu0 %v1601
    %1685 = vmatprep.subr.bf16.mxu0 0
    %1686 = vmatpush1.bf16.msra.mxu0 %v1602
    %1687 = vmatprep.subr.bf16.mxu0 0
    %1688 = vmatpush1.bf16.msra.mxu0 %v1603
    %1689 = vmatprep.subr.bf16.mxu0 0
    %1690 = vmatpush1.bf16.msra.mxu0 %v1604
    %1691 = vmatprep.subr.bf16.mxu0 0
    %1692 = vmatpush1.bf16.msra.mxu0 %v1605
    %1693 = vmatprep.subr.bf16.mxu0 0
    %1694 = vmatpush1.bf16.msra.mxu0 %v1606
    %1695 = vmatprep.subr.bf16.mxu0 0
    %1696 = vmatpush1.bf16.msra.mxu0 %v1607
    %1697 = vmatprep.subr.bf16.mxu0 0
    %1698 = vmatpush1.bf16.msra.mxu0 %v1608
    %1699 = vmatprep.subr.bf16.mxu0 0
    %1700 = vmatpush1.bf16.msra.mxu0 %v1609
    %1701 = vmatprep.subr.bf16.mxu0 0
    %1702 = vmatpush1.bf16.msra.mxu0 %v1610
    %1703 = vmatprep.mubr.bf16.mxu0 %v1626
    %1704 = vmatmul.mubr.bf16.gmra.mrb[0].mxu0 %v1625
    %v1705 = vpop.f32.mrb[0].mxu0
    %v1706 = vadd.f32 %v1666, %v1705
    %v1707 = vpop.f32.mrb[0].mxu0
    %v1708 = vpop.f32.mrb[0].mxu0
    %v1709 = vpop.f32.mrb[0].mxu0
    %1710 = vdwg.mxu0
    %1711 = vst [vmem:[#allocation2] sm:$0xff] %v1706
    // Predicated region
    $region30: #{tpu_custom_call.1} parent=1 // pred_check
      _
    $region31: #{tpu_custom_call.1} parent=1 // pred_check_branch
      %1713 = sbr.rel (0) target = $region33
    $region32: #{tpu_custom_call.1} parent=1 // pred_region
      %s1715 = ssub.s32 128, 128
      %1716 = vsyncadd [#allocation3], %s1715
      %s1718 = sshll.u32 [#allocation2], 4
      %s1719 = int_to_ptr.vmem [resolvable:$true] %s1718
      %1721 = dma.vmem_to_hbm [thread:$0]  %s1719, 128, %s7, [#allocation3]
    $region33: #{tpu_custom_call.1} parent=1 // pred_fallthru
      _
    // Predicated region
    $region34: #{tpu_custom_call.1} parent=1 // pred_check
      _
    $region35: #{tpu_custom_call.1} parent=1 // pred_check_branch
      %1723 = sbr.rel (0) target = $region37
    $region36: #{tpu_custom_call.1} parent=1 // pred_region
      %1724 = dma.done [#allocation3], 128
    $region37: #{tpu_custom_call.1} parent=1 // pred_fallthru
      _
    %1725 = vsyncpa [#allocation3], 1

</llo_original>
